<compile_context>
chip_gen: v7x
topology: tpu7x:2x2x1
jax: 0.10.0
libtpu: 0.0.40
codegen_flags: <defaults>
</compile_context>

<pallas_src>
import jax
import jax.numpy as jnp
from jax.experimental import pallas as pl
from jax.experimental.pallas import tpu as pltpu


def lstm_kernel(x_ref, wih_ref, whh_ref, b_ref, o_ref, xg_ref, h_ref, c_ref):
    # x_ref : [T_c, tile_b, D]      bf16 input chunk (time-major)
    # wih_ref: [D, 4*H_pad] bf16    whh_ref: [H_pad, 4*H_pad] bf16
    # b_ref : [1, 4*H_pad] f32      (b_ih + b_hh, gate-padded)
    # o_ref : [tile_b, H_pad] f32   h_T for this batch tile
    # xg_ref: [T_c, tile_b, 4*H_pad] f32 scratch (per-chunk input projections)
    # h_ref, c_ref: [tile_b, H_pad] f32 scratch carried across time chunks
    t_chunk = pl.program_id(1)
    Tc, tB, D = x_ref.shape
    Hp = whh_ref.shape[0]

    @pl.when(t_chunk == 0)
    def _():
        h_ref[...] = jnp.zeros_like(h_ref)
        c_ref[...] = jnp.zeros_like(c_ref)

    # Fused input projection for the whole chunk in one MXU matmul (bf16 in,
    # f32 accumulate), stashed in VMEM scratch.
    x2d = x_ref[...].reshape(Tc * tB, D)
    xg = jnp.dot(x2d, wih_ref[...], preferred_element_type=jnp.float32)
    xg_ref[...] = (xg + b_ref[...]).reshape(Tc, tB, 4 * Hp)

    whh = whh_ref[...]

    def step(t, carry):
        h, c = carry
        gates = xg_ref[t] + jnp.dot(
            h.astype(jnp.bfloat16), whh, preferred_element_type=jnp.float32)
        # PyTorch gate order: i, f, g, o (each slice 128-lane aligned).
        i = jax.nn.sigmoid(gates[:, 0 * Hp:1 * Hp])
        f = jax.nn.sigmoid(gates[:, 1 * Hp:2 * Hp])
        g = jnp.tanh(gates[:, 2 * Hp:3 * Hp])
        o = jax.nn.sigmoid(gates[:, 3 * Hp:4 * Hp])
        c_new = f * c + i * g
        h_new = o * jnp.tanh(c_new)
        return h_new, c_new

    h_last, c_last = jax.lax.fori_loop(
        0, Tc, step, (h_ref[...], c_ref[...]), unroll=True)
    h_ref[...] = h_last
    c_ref[...] = c_last

    @pl.when(t_chunk == pl.num_programs(1) - 1)
    def _():
        o_ref[...] = h_last.astype(o_ref.dtype)


def _round_up(x, m):
    return (x + m - 1) // m * m


def _choose_time_chunk(T, max_chunk=16):
    """Largest divisor of T not exceeding max_chunk (>= 1)."""
    for c in range(min(T, max(1, max_chunk)), 0, -1):
        if T % c == 0:
            return c
    return 1


def _pad_gate_cols(w, H, H_pad):
    """[rows, 4H] -> [rows, 4*H_pad], gate k placed at columns k*H_pad."""
    rows = w.shape[0]
    out = jnp.zeros((rows, 4 * H_pad), w.dtype)
    for k in range(4):
        out = out.at[:, k * H_pad:k * H_pad + H].set(w[:, k * H:(k + 1) * H])
    return out


def _vmem_footprint(tile_b, T_c, D, H_pad):
    bf16, f32 = 2, 4
    x_blk = 2 * T_c * tile_b * D * bf16                       # double-buffered
    w = 2 * (D * 4 * H_pad + H_pad * 4 * H_pad) * bf16        # resident weights
    b = 2 * 4 * H_pad * f32
    out = 2 * tile_b * H_pad * f32
    xg = T_c * tile_b * 4 * H_pad * f32
    hc = 2 * tile_b * H_pad * f32
    return x_blk + w + b + out + xg + hc


def lstm_last_hidden(act_embeds, w_ih, w_hh, b_ih, b_hh, *, tile_b=None):
    """act_embeds: [B, T, D]; w_ih: [4H, D]; w_hh: [4H, H]; b_*: [4H].

    Returns output[:, -1, :] == h_T, shape [B, H] (f32).
    """
    B, T, D = act_embeds.shape
    H = w_hh.shape[1]
    assert w_ih.shape == (4 * H, D)

    H_pad = _round_up(H, 128)
    T_c = _choose_time_chunk(T, 16)

    if tile_b is None:
        tile_b = min(256, _round_up(B, 8))
        # v7x megacore: make sure there are >= 2 batch grid steps when possible.
        if _round_up(B, tile_b) // tile_b < 2 and tile_b > 8:
            tile_b = max(8, _round_up(tile_b // 2, 8))
    assert tile_b % 8 == 0

    # Fit a conservative per-generation VMEM budget (v5e default scoped = 16MiB).
    budget = 24 * 1024 * 1024
    while _vmem_footprint(tile_b, T_c, D, H_pad) > budget and tile_b > 8:
        tile_b = max(8, _round_up(tile_b // 2, 8))
    while _vmem_footprint(tile_b, T_c, D, H_pad) > budget and T_c > 1:
        T_c = _choose_time_chunk(T, T_c - 1)

    B_pad = _round_up(B, tile_b)
    nb = B_pad // tile_b
    nt = T // T_c

    # Time-major bf16 input so the batch tile sits on the sublane axis.
    x_tm = jnp.transpose(act_embeds.astype(jnp.bfloat16), (1, 0, 2))
    if B_pad != B:
        x_tm = jnp.pad(x_tm, ((0, 0), (0, B_pad - B), (0, 0)))

    # Weights -> [in, out], gate-column padded to H_pad, bf16 for the MXU.
    wih_p = _pad_gate_cols(jnp.asarray(w_ih, jnp.float32).T, H, H_pad)
    wih_p = wih_p.astype(jnp.bfloat16)                          # [D, 4H_pad]
    whh_p = _pad_gate_cols(jnp.asarray(w_hh, jnp.float32).T, H, H_pad)
    whh_p = jnp.pad(whh_p, ((0, H_pad - H), (0, 0))).astype(jnp.bfloat16)
    bias_p = _pad_gate_cols((b_ih + b_hh).reshape(1, 4 * H).astype(jnp.float32),
                            H, H_pad)                           # [1, 4H_pad] f32

    footprint = _vmem_footprint(tile_b, T_c, D, H_pad)
    vmem_limit = int(min(64 * 1024 * 1024,
                         max(32 * 1024 * 1024,
                             int(1.3 * footprint) + 4 * 1024 * 1024)))

    cost = pl.CostEstimate(
        flops=int(2 * B_pad * T * (D + H_pad) * 4 * H_pad),
        transcendentals=int(5 * B_pad * T * H_pad),
        bytes_accessed=int(x_tm.size * 2
                           + (D * 4 * H_pad + H_pad * 4 * H_pad) * 2
                           + 4 * H_pad * 4 + B_pad * H_pad * 4),
    )

    out = pl.pallas_call(
        lstm_kernel,
        out_shape=jax.ShapeDtypeStruct((B_pad, H_pad), jnp.float32),
        grid=(nb, nt),
        in_specs=[
            pl.BlockSpec((T_c, tile_b, D), lambda b, t: (t, b, 0)),   # x chunk
            pl.BlockSpec((D, 4 * H_pad), lambda b, t: (0, 0)),        # W_ih^T
            pl.BlockSpec((H_pad, 4 * H_pad), lambda b, t: (0, 0)),    # W_hh^T
            pl.BlockSpec((1, 4 * H_pad), lambda b, t: (0, 0)),        # bias
        ],
        out_specs=pl.BlockSpec((tile_b, H_pad), lambda b, t: (b, 0)),
        scratch_shapes=[
            pltpu.VMEM((T_c, tile_b, 4 * H_pad), jnp.float32),        # x-gates
            pltpu.VMEM((tile_b, H_pad), jnp.float32),                 # h carry
            pltpu.VMEM((tile_b, H_pad), jnp.float32),                 # c carry
        ],
        compiler_params=pltpu.CompilerParams(
            dimension_semantics=("parallel", "arbitrary"),
            vmem_limit_bytes=vmem_limit),
        cost_estimate=cost,
    )(x_tm, wih_p, whh_p, bias_p)

    return out[:B, :H]


def lstm_last_hidden_ref(act_embeds, w_ih, w_hh, b_ih, b_hh):
    """Pure-JAX f32 reference matching torch.nn.LSTM(batch_first=True)."""
    B, T, D = act_embeds.shape
    H = w_hh.shape[1]

    def step(carry, x_t):
        h, c = carry
        gates = x_t @ w_ih.T + b_ih + h @ w_hh.T + b_hh
        i, f, g, o = jnp.split(gates, 4, axis=-1)
        i = jax.nn.sigmoid(i)
        f = jax.nn.sigmoid(f)
        g = jnp.tanh(g)
        o = jax.nn.sigmoid(o)
        c = f * c + i * g
        h = o * jnp.tanh(c)
        return (h, c), None

    h0 = jnp.zeros((B, H), jnp.float32)
    c0 = jnp.zeros((B, H), jnp.float32)
    (h_last, _), _ = jax.lax.scan(step, (h0, c0),
                                  jnp.transpose(act_embeds, (1, 0, 2)))
    return h_last


if __name__ == "__main__":
    key = jax.random.PRNGKey(0)
    k_x, k_wih, k_whh, k_bih, k_bhh = jax.random.split(key, 5)

    B, T = 16, 8
    act_ebd_size, user_ebd_size = 32, 32      # D, H
    D, H = act_ebd_size, user_ebd_size

    act_embeds = jax.random.normal(k_x, (B, T, D), dtype=jnp.float32)

    # Deterministic init mimicking nn.LSTM default U(-1/sqrt(H), 1/sqrt(H)).
    bound = 1.0 / jnp.sqrt(jnp.float32(H))
    w_ih = jax.random.uniform(k_wih, (4 * H, D), jnp.float32, -bound, bound)
    w_hh = jax.random.uniform(k_whh, (4 * H, H), jnp.float32, -bound, bound)
    b_ih = jax.random.uniform(k_bih, (4 * H,), jnp.float32, -bound, bound)
    b_hh = jax.random.uniform(k_bhh, (4 * H,), jnp.float32, -bound, bound)

    out = lstm_last_hidden(act_embeds, w_ih, w_hh, b_ih, b_hh)
    out = jax.block_until_ready(out)

    ref = lstm_last_hidden_ref(act_embeds, w_ih, w_hh, b_ih, b_hh)
    assert out.shape == (B, H)
    err = float(jnp.max(jnp.abs(out - ref)))
    # bf16 MXU operands with f32 accumulation -> small drift vs f32 reference.
    assert err < 3e-2, err

    print("KERNEL_OK")
</pallas_src>

<mosaic_0001>
module attributes {stable_mosaic.version = 11 : i64} {
  func.func @lstm_kernel(%arg0: i32, %arg1: i32, %arg2: memref<8x8x32xbf16, #tpu.memory_space<vmem>>, %arg3: memref<32x512xbf16, #tpu.memory_space<vmem>>, %arg4: memref<128x512xbf16, #tpu.memory_space<vmem>>, %arg5: memref<1x512xf32, #tpu.memory_space<vmem>>, %arg6: memref<8x128xf32, #tpu.memory_space<vmem>>, %arg7: memref<8x8x512xf32, #tpu.memory_space<vmem>>, %arg8: memref<8x128xf32, #tpu.memory_space<vmem>>, %arg9: memref<8x128xf32, #tpu.memory_space<vmem>>) attributes {dimension_semantics = [#tpu.dimension_semantics<parallel>, #tpu.dimension_semantics<arbitrary>], iteration_bounds = array<i64: 2, 1>, scalar_prefetch = 0 : i64, scratch_operands = 3 : i64, tpu.core_type = #tpu.core_type<tc>, window_params = [{transform_indices = @transform_0, window_bounds = array<i64: 8, 8, 32>}, {pipeline_mode = #tpu.pipeline_mode<synchronous>, transform_indices = @transform_1, window_bounds = array<i64: 32, 512>}, {pipeline_mode = #tpu.pipeline_mode<synchronous>, transform_indices = @transform_2, window_bounds = array<i64: 128, 512>}, {pipeline_mode = #tpu.pipeline_mode<synchronous>, transform_indices = @transform_3, window_bounds = array<i64: 1, 512>}, {transform_indices = @transform_4, window_bounds = array<i64: 8, 128>}]} {
    %c0_i32 = arith.constant 0 : i32
    %0 = arith.cmpi eq, %arg1, %c0_i32 : i32
    %1 = arith.extui %0 : i1 to i32
    %c0_i32_0 = arith.constant 0 : i32
    %2 = arith.cmpi ne, %1, %c0_i32_0 : i32
    scf.if %2 {
      %cst_71 = arith.constant 0.000000e+00 : f32
      %268 = vector.broadcast %cst_71 : f32 to vector<8x128xf32>
      %c0_72 = arith.constant 0 : index
      %c0_73 = arith.constant 0 : index
      %269 = vector.load %arg8[%c0_72, %c0_73] : memref<8x128xf32, #tpu.memory_space<vmem>>, vector<8x128xf32>
      tpu.vector_store %arg8[%c0_72, %c0_73], %268 {strides = array<i32>} : memref<8x128xf32, #tpu.memory_space<vmem>>, vector<8x128xf32>,
      %cst_74 = arith.constant 0.000000e+00 : f32
      %270 = vector.broadcast %cst_74 : f32 to vector<8x128xf32>
      %c0_75 = arith.constant 0 : index
      %c0_76 = arith.constant 0 : index
      %271 = vector.load %arg9[%c0_75, %c0_76] : memref<8x128xf32, #tpu.memory_space<vmem>>, vector<8x128xf32>
      tpu.vector_store %arg9[%c0_75, %c0_76], %270 {strides = array<i32>} : memref<8x128xf32, #tpu.memory_space<vmem>>, vector<8x128xf32>,
    } else {
    }
    %c0 = arith.constant 0 : index
    %c0_1 = arith.constant 0 : index
    %c0_2 = arith.constant 0 : index
    %3 = vector.load %arg2[%c0, %c0_1, %c0_2] : memref<8x8x32xbf16, #tpu.memory_space<vmem>>, vector<8x8x32xbf16>
    %4 = vector.shape_cast %3 : vector<8x8x32xbf16> to vector<64x32xbf16>
    %c0_3 = arith.constant 0 : index
    %c0_4 = arith.constant 0 : index
    %5 = vector.load %arg3[%c0_3, %c0_4] : memref<32x512xbf16, #tpu.memory_space<vmem>>, vector<32x512xbf16>
    %cst = arith.constant dense<0.000000e+00> : vector<64x512xf32>
    %6 = tpu.matmul %4, %5, %cst {dimension_numbers = #tpu.dot_dimension_numbers<[1], [0], [0], [1], [0, 0, 1, 1], [], []>} : vector<64x32xbf16>, vector<32x512xbf16>, vector<64x512xf32> -> vector<64x512xf32>
    %c0_5 = arith.constant 0 : index
    %c0_6 = arith.constant 0 : index
    %7 = vector.load %arg5[%c0_5, %c0_6] : memref<1x512xf32, #tpu.memory_space<vmem>>, vector<1x512xf32>
    %8 = vector.broadcast %7 : vector<1x512xf32> to vector<64x512xf32>
    %9 = arith.addf %6, %8 : vector<64x512xf32>
    %10 = vector.shape_cast %9 : vector<64x512xf32> to vector<8x8x512xf32>
    %c0_7 = arith.constant 0 : index
    %c0_8 = arith.constant 0 : index
    %c0_9 = arith.constant 0 : index
    %11 = vector.load %arg7[%c0_7, %c0_8, %c0_9] : memref<8x8x512xf32, #tpu.memory_space<vmem>>, vector<8x8x512xf32>
    tpu.vector_store %arg7[%c0_7, %c0_8, %c0_9], %10 {strides = array<i32>} : memref<8x8x512xf32, #tpu.memory_space<vmem>>, vector<8x8x512xf32>,
    %c0_10 = arith.constant 0 : index
    %c0_11 = arith.constant 0 : index
    %12 = vector.load %arg4[%c0_10, %c0_11] : memref<128x512xbf16, #tpu.memory_space<vmem>>, vector<128x512xbf16>
    %c0_12 = arith.constant 0 : index
    %c0_13 = arith.constant 0 : index
    %13 = vector.load %arg8[%c0_12, %c0_13] : memref<8x128xf32, #tpu.memory_space<vmem>>, vector<8x128xf32>
    %c0_14 = arith.constant 0 : index
    %c0_15 = arith.constant 0 : index
    %14 = vector.load %arg9[%c0_14, %c0_15] : memref<8x128xf32, #tpu.memory_space<vmem>>, vector<8x128xf32>
    %c0_i32_16 = arith.constant 0 : i32
    %15 = arith.index_cast %c0_i32_16 : i32 to index
    %c0_17 = arith.constant 0 : index
    %c0_18 = arith.constant 0 : index
    %16 = vector.load %arg7[%15, %c0_17, %c0_18] : memref<8x8x512xf32, #tpu.memory_space<vmem>>, vector<1x8x512xf32>
    %17 = vector.shape_cast %16 : vector<1x8x512xf32> to vector<8x512xf32>
    %18 = arith.truncf %13 : vector<8x128xf32> to vector<8x128xbf16>
    %cst_19 = arith.constant dense<0.000000e+00> : vector<8x512xf32>
    %19 = tpu.matmul %18, %12, %cst_19 {dimension_numbers = #tpu.dot_dimension_numbers<[1], [0], [0], [1], [0, 0, 1, 1], [], []>} : vector<8x128xbf16>, vector<128x512xbf16>, vector<8x512xf32> -> vector<8x512xf32>
    %20 = arith.addf %17, %19 : vector<8x512xf32>
    %21 = vector.extract_strided_slice %20 {offsets = [0, 0], sizes = [8, 128], strides = [1, 1]} : vector<8x512xf32> to vector<8x128xf32>
    %22 = arith.negf %21 : vector<8x128xf32>
    %23 = math.exp %22 : vector<8x128xf32>
    %cst_20 = arith.constant 1.000000e+00 : f32
    %24 = vector.broadcast %cst_20 : f32 to vector<8x128xf32>
    %25 = arith.addf %24, %23 : vector<8x128xf32>
    %26 = arith.divf %24, %25 : vector<8x128xf32>
    %27 = vector.extract_strided_slice %20 {offsets = [0, 128], sizes = [8, 128], strides = [1, 1]} : vector<8x512xf32> to vector<8x128xf32>
    %28 = arith.negf %27 : vector<8x128xf32>
    %29 = math.exp %28 : vector<8x128xf32>
    %cst_21 = arith.constant 1.000000e+00 : f32
    %30 = vector.broadcast %cst_21 : f32 to vector<8x128xf32>
    %31 = arith.addf %30, %29 : vector<8x128xf32>
    %32 = arith.divf %30, %31 : vector<8x128xf32>
    %33 = vector.extract_strided_slice %20 {offsets = [0, 256], sizes = [8, 128], strides = [1, 1]} : vector<8x512xf32> to vector<8x128xf32>
    %34 = math.tanh %33 : vector<8x128xf32>
    %35 = vector.extract_strided_slice %20 {offsets = [0, 384], sizes = [8, 128], strides = [1, 1]} : vector<8x512xf32> to vector<8x128xf32>
    %36 = arith.negf %35 : vector<8x128xf32>
    %37 = math.exp %36 : vector<8x128xf32>
    %cst_22 = arith.constant 1.000000e+00 : f32
    %38 = vector.broadcast %cst_22 : f32 to vector<8x128xf32>
    %39 = arith.addf %38, %37 : vector<8x128xf32>
    %40 = arith.divf %38, %39 : vector<8x128xf32>
    %41 = arith.mulf %32, %14 : vector<8x128xf32>
    %42 = arith.mulf %26, %34 : vector<8x128xf32>
    %43 = arith.addf %41, %42 : vector<8x128xf32>
    %44 = math.tanh %43 : vector<8x128xf32>
    %45 = arith.mulf %40, %44 : vector<8x128xf32>
    %c1_i32 = arith.constant 1 : i32
    %46 = arith.index_cast %c1_i32 : i32 to index
    %c0_23 = arith.constant 0 : index
    %c0_24 = arith.constant 0 : index
    %47 = vector.load %arg7[%46, %c0_23, %c0_24] : memref<8x8x512xf32, #tpu.memory_space<vmem>>, vector<1x8x512xf32>
    %48 = vector.shape_cast %47 : vector<1x8x512xf32> to vector<8x512xf32>
    %49 = arith.truncf %45 : vector<8x128xf32> to vector<8x128xbf16>
    %cst_25 = arith.constant dense<0.000000e+00> : vector<8x512xf32>
    %50 = tpu.matmul %49, %12, %cst_25 {dimension_numbers = #tpu.dot_dimension_numbers<[1], [0], [0], [1], [0, 0, 1, 1], [], []>} : vector<8x128xbf16>, vector<128x512xbf16>, vector<8x512xf32> -> vector<8x512xf32>
    %51 = arith.addf %48, %50 : vector<8x512xf32>
    %52 = vector.extract_strided_slice %51 {offsets = [0, 0], sizes = [8, 128], strides = [1, 1]} : vector<8x512xf32> to vector<8x128xf32>
    %53 = arith.negf %52 : vector<8x128xf32>
    %54 = math.exp %53 : vector<8x128xf32>
    %cst_26 = arith.constant 1.000000e+00 : f32
    %55 = vector.broadcast %cst_26 : f32 to vector<8x128xf32>
    %56 = arith.addf %55, %54 : vector<8x128xf32>
    %57 = arith.divf %55, %56 : vector<8x128xf32>
    %58 = vector.extract_strided_slice %51 {offsets = [0, 128], sizes = [8, 128], strides = [1, 1]} : vector<8x512xf32> to vector<8x128xf32>
    %59 = arith.negf %58 : vector<8x128xf32>
    %60 = math.exp %59 : vector<8x128xf32>
    %cst_27 = arith.constant 1.000000e+00 : f32
    %61 = vector.broadcast %cst_27 : f32 to vector<8x128xf32>
    %62 = arith.addf %61, %60 : vector<8x128xf32>
    %63 = arith.divf %61, %62 : vector<8x128xf32>
    %64 = vector.extract_strided_slice %51 {offsets = [0, 256], sizes = [8, 128], strides = [1, 1]} : vector<8x512xf32> to vector<8x128xf32>
    %65 = math.tanh %64 : vector<8x128xf32>
    %66 = vector.extract_strided_slice %51 {offsets = [0, 384], sizes = [8, 128], strides = [1, 1]} : vector<8x512xf32> to vector<8x128xf32>
    %67 = arith.negf %66 : vector<8x128xf32>
    %68 = math.exp %67 : vector<8x128xf32>
    %cst_28 = arith.constant 1.000000e+00 : f32
    %69 = vector.broadcast %cst_28 : f32 to vector<8x128xf32>
    %70 = arith.addf %69, %68 : vector<8x128xf32>
    %71 = arith.divf %69, %70 : vector<8x128xf32>
    %72 = arith.mulf %63, %43 : vector<8x128xf32>
    %73 = arith.mulf %57, %65 : vector<8x128xf32>
    %74 = arith.addf %72, %73 : vector<8x128xf32>
    %75 = math.tanh %74 : vector<8x128xf32>
    %76 = arith.mulf %71, %75 : vector<8x128xf32>
    %c2_i32 = arith.constant 2 : i32
    %77 = arith.index_cast %c2_i32 : i32 to index
    %c0_29 = arith.constant 0 : index
    %c0_30 = arith.constant 0 : index
    %78 = vector.load %arg7[%77, %c0_29, %c0_30] : memref<8x8x512xf32, #tpu.memory_space<vmem>>, vector<1x8x512xf32>
    %79 = vector.shape_cast %78 : vector<1x8x512xf32> to vector<8x512xf32>
    %80 = arith.truncf %76 : vector<8x128xf32> to vector<8x128xbf16>
    %cst_31 = arith.constant dense<0.000000e+00> : vector<8x512xf32>
    %81 = tpu.matmul %80, %12, %cst_31 {dimension_numbers = #tpu.dot_dimension_numbers<[1], [0], [0], [1], [0, 0, 1, 1], [], []>} : vector<8x128xbf16>, vector<128x512xbf16>, vector<8x512xf32> -> vector<8x512xf32>
    %82 = arith.addf %79, %81 : vector<8x512xf32>
    %83 = vector.extract_strided_slice %82 {offsets = [0, 0], sizes = [8, 128], strides = [1, 1]} : vector<8x512xf32> to vector<8x128xf32>
    %84 = arith.negf %83 : vector<8x128xf32>
    %85 = math.exp %84 : vector<8x128xf32>
    %cst_32 = arith.constant 1.000000e+00 : f32
    %86 = vector.broadcast %cst_32 : f32 to vector<8x128xf32>
    %87 = arith.addf %86, %85 : vector<8x128xf32>
    %88 = arith.divf %86, %87 : vector<8x128xf32>
    %89 = vector.extract_strided_slice %82 {offsets = [0, 128], sizes = [8, 128], strides = [1, 1]} : vector<8x512xf32> to vector<8x128xf32>
    %90 = arith.negf %89 : vector<8x128xf32>
    %91 = math.exp %90 : vector<8x128xf32>
    %cst_33 = arith.constant 1.000000e+00 : f32
    %92 = vector.broadcast %cst_33 : f32 to vector<8x128xf32>
    %93 = arith.addf %92, %91 : vector<8x128xf32>
    %94 = arith.divf %92, %93 : vector<8x128xf32>
    %95 = vector.extract_strided_slice %82 {offsets = [0, 256], sizes = [8, 128], strides = [1, 1]} : vector<8x512xf32> to vector<8x128xf32>
    %96 = math.tanh %95 : vector<8x128xf32>
    %97 = vector.extract_strided_slice %82 {offsets = [0, 384], sizes = [8, 128], strides = [1, 1]} : vector<8x512xf32> to vector<8x128xf32>
    %98 = arith.negf %97 : vector<8x128xf32>
    %99 = math.exp %98 : vector<8x128xf32>
    %cst_34 = arith.constant 1.000000e+00 : f32
    %100 = vector.broadcast %cst_34 : f32 to vector<8x128xf32>
    %101 = arith.addf %100, %99 : vector<8x128xf32>
    %102 = arith.divf %100, %101 : vector<8x128xf32>
    %103 = arith.mulf %94, %74 : vector<8x128xf32>
    %104 = arith.mulf %88, %96 : vector<8x128xf32>
    %105 = arith.addf %103, %104 : vector<8x128xf32>
    %106 = math.tanh %105 : vector<8x128xf32>
    %107 = arith.mulf %102, %106 : vector<8x128xf32>
    %c3_i32 = arith.constant 3 : i32
    %108 = arith.index_cast %c3_i32 : i32 to index
    %c0_35 = arith.constant 0 : index
    %c0_36 = arith.constant 0 : index
    %109 = vector.load %arg7[%108, %c0_35, %c0_36] : memref<8x8x512xf32, #tpu.memory_space<vmem>>, vector<1x8x512xf32>
    %110 = vector.shape_cast %109 : vector<1x8x512xf32> to vector<8x512xf32>
    %111 = arith.truncf %107 : vector<8x128xf32> to vector<8x128xbf16>
    %cst_37 = arith.constant dense<0.000000e+00> : vector<8x512xf32>
    %112 = tpu.matmul %111, %12, %cst_37 {dimension_numbers = #tpu.dot_dimension_numbers<[1], [0], [0], [1], [0, 0, 1, 1], [], []>} : vector<8x128xbf16>, vector<128x512xbf16>, vector<8x512xf32> -> vector<8x512xf32>
    %113 = arith.addf %110, %112 : vector<8x512xf32>
    %114 = vector.extract_strided_slice %113 {offsets = [0, 0], sizes = [8, 128], strides = [1, 1]} : vector<8x512xf32> to vector<8x128xf32>
    %115 = arith.negf %114 : vector<8x128xf32>
    %116 = math.exp %115 : vector<8x128xf32>
    %cst_38 = arith.constant 1.000000e+00 : f32
    %117 = vector.broadcast %cst_38 : f32 to vector<8x128xf32>
    %118 = arith.addf %117, %116 : vector<8x128xf32>
    %119 = arith.divf %117, %118 : vector<8x128xf32>
    %120 = vector.extract_strided_slice %113 {offsets = [0, 128], sizes = [8, 128], strides = [1, 1]} : vector<8x512xf32> to vector<8x128xf32>
    %121 = arith.negf %120 : vector<8x128xf32>
    %122 = math.exp %121 : vector<8x128xf32>
    %cst_39 = arith.constant 1.000000e+00 : f32
    %123 = vector.broadcast %cst_39 : f32 to vector<8x128xf32>
    %124 = arith.addf %123, %122 : vector<8x128xf32>
    %125 = arith.divf %123, %124 : vector<8x128xf32>
    %126 = vector.extract_strided_slice %113 {offsets = [0, 256], sizes = [8, 128], strides = [1, 1]} : vector<8x512xf32> to vector<8x128xf32>
    %127 = math.tanh %126 : vector<8x128xf32>
    %128 = vector.extract_strided_slice %113 {offsets = [0, 384], sizes = [8, 128], strides = [1, 1]} : vector<8x512xf32> to vector<8x128xf32>
    %129 = arith.negf %128 : vector<8x128xf32>
    %130 = math.exp %129 : vector<8x128xf32>
    %cst_40 = arith.constant 1.000000e+00 : f32
    %131 = vector.broadcast %cst_40 : f32 to vector<8x128xf32>
    %132 = arith.addf %131, %130 : vector<8x128xf32>
    %133 = arith.divf %131, %132 : vector<8x128xf32>
    %134 = arith.mulf %125, %105 : vector<8x128xf32>
    %135 = arith.mulf %119, %127 : vector<8x128xf32>
    %136 = arith.addf %134, %135 : vector<8x128xf32>
    %137 = math.tanh %136 : vector<8x128xf32>
    %138 = arith.mulf %133, %137 : vector<8x128xf32>
    %c4_i32 = arith.constant 4 : i32
    %139 = arith.index_cast %c4_i32 : i32 to index
    %c0_41 = arith.constant 0 : index
    %c0_42 = arith.constant 0 : index
    %140 = vector.load %arg7[%139, %c0_41, %c0_42] : memref<8x8x512xf32, #tpu.memory_space<vmem>>, vector<1x8x512xf32>
    %141 = vector.shape_cast %140 : vector<1x8x512xf32> to vector<8x512xf32>
    %142 = arith.truncf %138 : vector<8x128xf32> to vector<8x128xbf16>
    %cst_43 = arith.constant dense<0.000000e+00> : vector<8x512xf32>
    %143 = tpu.matmul %142, %12, %cst_43 {dimension_numbers = #tpu.dot_dimension_numbers<[1], [0], [0], [1], [0, 0, 1, 1], [], []>} : vector<8x128xbf16>, vector<128x512xbf16>, vector<8x512xf32> -> vector<8x512xf32>
    %144 = arith.addf %141, %143 : vector<8x512xf32>
    %145 = vector.extract_strided_slice %144 {offsets = [0, 0], sizes = [8, 128], strides = [1, 1]} : vector<8x512xf32> to vector<8x128xf32>
    %146 = arith.negf %145 : vector<8x128xf32>
    %147 = math.exp %146 : vector<8x128xf32>
    %cst_44 = arith.constant 1.000000e+00 : f32
    %148 = vector.broadcast %cst_44 : f32 to vector<8x128xf32>
    %149 = arith.addf %148, %147 : vector<8x128xf32>
    %150 = arith.divf %148, %149 : vector<8x128xf32>
    %151 = vector.extract_strided_slice %144 {offsets = [0, 128], sizes = [8, 128], strides = [1, 1]} : vector<8x512xf32> to vector<8x128xf32>
    %152 = arith.negf %151 : vector<8x128xf32>
    %153 = math.exp %152 : vector<8x128xf32>
    %cst_45 = arith.constant 1.000000e+00 : f32
    %154 = vector.broadcast %cst_45 : f32 to vector<8x128xf32>
    %155 = arith.addf %154, %153 : vector<8x128xf32>
    %156 = arith.divf %154, %155 : vector<8x128xf32>
    %157 = vector.extract_strided_slice %144 {offsets = [0, 256], sizes = [8, 128], strides = [1, 1]} : vector<8x512xf32> to vector<8x128xf32>
    %158 = math.tanh %157 : vector<8x128xf32>
    %159 = vector.extract_strided_slice %144 {offsets = [0, 384], sizes = [8, 128], strides = [1, 1]} : vector<8x512xf32> to vector<8x128xf32>
    %160 = arith.negf %159 : vector<8x128xf32>
    %161 = math.exp %160 : vector<8x128xf32>
    %cst_46 = arith.constant 1.000000e+00 : f32
    %162 = vector.broadcast %cst_46 : f32 to vector<8x128xf32>
    %163 = arith.addf %162, %161 : vector<8x128xf32>
    %164 = arith.divf %162, %163 : vector<8x128xf32>
    %165 = arith.mulf %156, %136 : vector<8x128xf32>
    %166 = arith.mulf %150, %158 : vector<8x128xf32>
    %167 = arith.addf %165, %166 : vector<8x128xf32>
    %168 = math.tanh %167 : vector<8x128xf32>
    %169 = arith.mulf %164, %168 : vector<8x128xf32>
    %c5_i32 = arith.constant 5 : i32
    %170 = arith.index_cast %c5_i32 : i32 to index
    %c0_47 = arith.constant 0 : index
    %c0_48 = arith.constant 0 : index
    %171 = vector.load %arg7[%170, %c0_47, %c0_48] : memref<8x8x512xf32, #tpu.memory_space<vmem>>, vector<1x8x512xf32>
    %172 = vector.shape_cast %171 : vector<1x8x512xf32> to vector<8x512xf32>
    %173 = arith.truncf %169 : vector<8x128xf32> to vector<8x128xbf16>
    %cst_49 = arith.constant dense<0.000000e+00> : vector<8x512xf32>
    %174 = tpu.matmul %173, %12, %cst_49 {dimension_numbers = #tpu.dot_dimension_numbers<[1], [0], [0], [1], [0, 0, 1, 1], [], []>} : vector<8x128xbf16>, vector<128x512xbf16>, vector<8x512xf32> -> vector<8x512xf32>
    %175 = arith.addf %172, %174 : vector<8x512xf32>
    %176 = vector.extract_strided_slice %175 {offsets = [0, 0], sizes = [8, 128], strides = [1, 1]} : vector<8x512xf32> to vector<8x128xf32>
    %177 = arith.negf %176 : vector<8x128xf32>
    %178 = math.exp %177 : vector<8x128xf32>
    %cst_50 = arith.constant 1.000000e+00 : f32
    %179 = vector.broadcast %cst_50 : f32 to vector<8x128xf32>
    %180 = arith.addf %179, %178 : vector<8x128xf32>
    %181 = arith.divf %179, %180 : vector<8x128xf32>
    %182 = vector.extract_strided_slice %175 {offsets = [0, 128], sizes = [8, 128], strides = [1, 1]} : vector<8x512xf32> to vector<8x128xf32>
    %183 = arith.negf %182 : vector<8x128xf32>
    %184 = math.exp %183 : vector<8x128xf32>
    %cst_51 = arith.constant 1.000000e+00 : f32
    %185 = vector.broadcast %cst_51 : f32 to vector<8x128xf32>
    %186 = arith.addf %185, %184 : vector<8x128xf32>
    %187 = arith.divf %185, %186 : vector<8x128xf32>
    %188 = vector.extract_strided_slice %175 {offsets = [0, 256], sizes = [8, 128], strides = [1, 1]} : vector<8x512xf32> to vector<8x128xf32>
    %189 = math.tanh %188 : vector<8x128xf32>
    %190 = vector.extract_strided_slice %175 {offsets = [0, 384], sizes = [8, 128], strides = [1, 1]} : vector<8x512xf32> to vector<8x128xf32>
    %191 = arith.negf %190 : vector<8x128xf32>
    %192 = math.exp %191 : vector<8x128xf32>
    %cst_52 = arith.constant 1.000000e+00 : f32
    %193 = vector.broadcast %cst_52 : f32 to vector<8x128xf32>
    %194 = arith.addf %193, %192 : vector<8x128xf32>
    %195 = arith.divf %193, %194 : vector<8x128xf32>
    %196 = arith.mulf %187, %167 : vector<8x128xf32>
    %197 = arith.mulf %181, %189 : vector<8x128xf32>
    %198 = arith.addf %196, %197 : vector<8x128xf32>
    %199 = math.tanh %198 : vector<8x128xf32>
    %200 = arith.mulf %195, %199 : vector<8x128xf32>
    %c6_i32 = arith.constant 6 : i32
    %201 = arith.index_cast %c6_i32 : i32 to index
    %c0_53 = arith.constant 0 : index
    %c0_54 = arith.constant 0 : index
    %202 = vector.load %arg7[%201, %c0_53, %c0_54] : memref<8x8x512xf32, #tpu.memory_space<vmem>>, vector<1x8x512xf32>
    %203 = vector.shape_cast %202 : vector<1x8x512xf32> to vector<8x512xf32>
    %204 = arith.truncf %200 : vector<8x128xf32> to vector<8x128xbf16>
    %cst_55 = arith.constant dense<0.000000e+00> : vector<8x512xf32>
    %205 = tpu.matmul %204, %12, %cst_55 {dimension_numbers = #tpu.dot_dimension_numbers<[1], [0], [0], [1], [0, 0, 1, 1], [], []>} : vector<8x128xbf16>, vector<128x512xbf16>, vector<8x512xf32> -> vector<8x512xf32>
    %206 = arith.addf %203, %205 : vector<8x512xf32>
    %207 = vector.extract_strided_slice %206 {offsets = [0, 0], sizes = [8, 128], strides = [1, 1]} : vector<8x512xf32> to vector<8x128xf32>
    %208 = arith.negf %207 : vector<8x128xf32>
    %209 = math.exp %208 : vector<8x128xf32>
    %cst_56 = arith.constant 1.000000e+00 : f32
    %210 = vector.broadcast %cst_56 : f32 to vector<8x128xf32>
    %211 = arith.addf %210, %209 : vector<8x128xf32>
    %212 = arith.divf %210, %211 : vector<8x128xf32>
    %213 = vector.extract_strided_slice %206 {offsets = [0, 128], sizes = [8, 128], strides = [1, 1]} : vector<8x512xf32> to vector<8x128xf32>
    %214 = arith.negf %213 : vector<8x128xf32>
    %215 = math.exp %214 : vector<8x128xf32>
    %cst_57 = arith.constant 1.000000e+00 : f32
    %216 = vector.broadcast %cst_57 : f32 to vector<8x128xf32>
    %217 = arith.addf %216, %215 : vector<8x128xf32>
    %218 = arith.divf %216, %217 : vector<8x128xf32>
    %219 = vector.extract_strided_slice %206 {offsets = [0, 256], sizes = [8, 128], strides = [1, 1]} : vector<8x512xf32> to vector<8x128xf32>
    %220 = math.tanh %219 : vector<8x128xf32>
    %221 = vector.extract_strided_slice %206 {offsets = [0, 384], sizes = [8, 128], strides = [1, 1]} : vector<8x512xf32> to vector<8x128xf32>
    %222 = arith.negf %221 : vector<8x128xf32>
    %223 = math.exp %222 : vector<8x128xf32>
    %cst_58 = arith.constant 1.000000e+00 : f32
    %224 = vector.broadcast %cst_58 : f32 to vector<8x128xf32>
    %225 = arith.addf %224, %223 : vector<8x128xf32>
    %226 = arith.divf %224, %225 : vector<8x128xf32>
    %227 = arith.mulf %218, %198 : vector<8x128xf32>
    %228 = arith.mulf %212, %220 : vector<8x128xf32>
    %229 = arith.addf %227, %228 : vector<8x128xf32>
    %230 = math.tanh %229 : vector<8x128xf32>
    %231 = arith.mulf %226, %230 : vector<8x128xf32>
    %c7_i32 = arith.constant 7 : i32
    %232 = arith.index_cast %c7_i32 : i32 to index
    %c0_59 = arith.constant 0 : index
    %c0_60 = arith.constant 0 : index
    %233 = vector.load %arg7[%232, %c0_59, %c0_60] : memref<8x8x512xf32, #tpu.memory_space<vmem>>, vector<1x8x512xf32>
    %234 = vector.shape_cast %233 : vector<1x8x512xf32> to vector<8x512xf32>
    %235 = arith.truncf %231 : vector<8x128xf32> to vector<8x128xbf16>
    %cst_61 = arith.constant dense<0.000000e+00> : vector<8x512xf32>
    %236 = tpu.matmul %235, %12, %cst_61 {dimension_numbers = #tpu.dot_dimension_numbers<[1], [0], [0], [1], [0, 0, 1, 1], [], []>} : vector<8x128xbf16>, vector<128x512xbf16>, vector<8x512xf32> -> vector<8x512xf32>
    %237 = arith.addf %234, %236 : vector<8x512xf32>
    %238 = vector.extract_strided_slice %237 {offsets = [0, 0], sizes = [8, 128], strides = [1, 1]} : vector<8x512xf32> to vector<8x128xf32>
    %239 = arith.negf %238 : vector<8x128xf32>
    %240 = math.exp %239 : vector<8x128xf32>
    %cst_62 = arith.constant 1.000000e+00 : f32
    %241 = vector.broadcast %cst_62 : f32 to vector<8x128xf32>
    %242 = arith.addf %241, %240 : vector<8x128xf32>
    %243 = arith.divf %241, %242 : vector<8x128xf32>
    %244 = vector.extract_strided_slice %237 {offsets = [0, 128], sizes = [8, 128], strides = [1, 1]} : vector<8x512xf32> to vector<8x128xf32>
    %245 = arith.negf %244 : vector<8x128xf32>
    %246 = math.exp %245 : vector<8x128xf32>
    %cst_63 = arith.constant 1.000000e+00 : f32
    %247 = vector.broadcast %cst_63 : f32 to vector<8x128xf32>
    %248 = arith.addf %247, %246 : vector<8x128xf32>
    %249 = arith.divf %247, %248 : vector<8x128xf32>
    %250 = vector.extract_strided_slice %237 {offsets = [0, 256], sizes = [8, 128], strides = [1, 1]} : vector<8x512xf32> to vector<8x128xf32>
    %251 = math.tanh %250 : vector<8x128xf32>
    %252 = vector.extract_strided_slice %237 {offsets = [0, 384], sizes = [8, 128], strides = [1, 1]} : vector<8x512xf32> to vector<8x128xf32>
    %253 = arith.negf %252 : vector<8x128xf32>
    %254 = math.exp %253 : vector<8x128xf32>
    %cst_64 = arith.constant 1.000000e+00 : f32
    %255 = vector.broadcast %cst_64 : f32 to vector<8x128xf32>
    %256 = arith.addf %255, %254 : vector<8x128xf32>
    %257 = arith.divf %255, %256 : vector<8x128xf32>
    %258 = arith.mulf %249, %229 : vector<8x128xf32>
    %259 = arith.mulf %243, %251 : vector<8x128xf32>
    %260 = arith.addf %258, %259 : vector<8x128xf32>
    %261 = math.tanh %260 : vector<8x128xf32>
    %262 = arith.mulf %257, %261 : vector<8x128xf32>
    %c8_i32 = arith.constant 8 : i32
    %c0_65 = arith.constant 0 : index
    %c0_66 = arith.constant 0 : index
    %263 = vector.load %arg8[%c0_65, %c0_66] : memref<8x128xf32, #tpu.memory_space<vmem>>, vector<8x128xf32>
    tpu.vector_store %arg8[%c0_65, %c0_66], %262 {strides = array<i32>} : memref<8x128xf32, #tpu.memory_space<vmem>>, vector<8x128xf32>,
    %c0_67 = arith.constant 0 : index
    %c0_68 = arith.constant 0 : index
    %264 = vector.load %arg9[%c0_67, %c0_68] : memref<8x128xf32, #tpu.memory_space<vmem>>, vector<8x128xf32>
    tpu.vector_store %arg9[%c0_67, %c0_68], %260 {strides = array<i32>} : memref<8x128xf32, #tpu.memory_space<vmem>>, vector<8x128xf32>,
    %c0_i32_69 = arith.constant 0 : i32
    %265 = arith.cmpi eq, %arg1, %c0_i32_69 : i32
    %266 = arith.extui %265 : i1 to i32
    %c0_i32_70 = arith.constant 0 : i32
    %267 = arith.cmpi ne, %266, %c0_i32_70 : i32
    scf.if %267 {
      %c0_71 = arith.constant 0 : index
      %c0_72 = arith.constant 0 : index
      %268 = vector.load %arg6[%c0_71, %c0_72] : memref<8x128xf32, #tpu.memory_space<vmem>>, vector<8x128xf32>
      tpu.vector_store %arg6[%c0_71, %c0_72], %262 {strides = array<i32>} : memref<8x128xf32, #tpu.memory_space<vmem>>, vector<8x128xf32>,
    } else {
    }
    return
  }
  func.func @transform_0(%arg0: i32, %arg1: i32) -> (i32, i32, i32) {
    %c0_i32 = arith.constant 0 : i32
    %c0_i32_0 = arith.constant 0 : i32
    return %arg1, %arg0, %c0_i32 : i32, i32, i32
  }
  func.func @transform_1(%arg0: i32, %arg1: i32) -> (i32, i32) {
    %c0_i32 = arith.constant 0 : i32
    %c0_i32_0 = arith.constant 0 : i32
    %c0_i32_1 = arith.constant 0 : i32
    return %c0_i32, %c0_i32_0 : i32, i32
  }
  func.func @transform_2(%arg0: i32, %arg1: i32) -> (i32, i32) {
    %c0_i32 = arith.constant 0 : i32
    %c0_i32_0 = arith.constant 0 : i32
    %c0_i32_1 = arith.constant 0 : i32
    return %c0_i32, %c0_i32_0 : i32, i32
  }
  func.func @transform_3(%arg0: i32, %arg1: i32) -> (i32, i32) {
    %c0_i32 = arith.constant 0 : i32
    %c0_i32_0 = arith.constant 0 : i32
    %c0_i32_1 = arith.constant 0 : i32
    return %c0_i32, %c0_i32_0 : i32, i32
  }
  func.func @transform_4(%arg0: i32, %arg1: i32) -> (i32, i32) {
    %c0_i32 = arith.constant 0 : i32
    %c0_i32_0 = arith.constant 0 : i32
    return %arg0, %c0_i32 : i32, i32
  }
}

</mosaic_0001>

<llo_original>
// kernel: tpu_custom_call.1
$region0: #{tpu_custom_call.1}
  #allocation0 [shape = 'u32[]', space=smem, size = 0x4, offset = 0x4, fixed_abs, tag = 'smem constant byte address 0x4 - core index']
  #allocation1 [shape = 'u32[144,128]{1,0:T(1,128)}', space=vmem, size = 0x12000, scoped, tag = 'internal scratch']
  #allocation2 [shape = 'f32[8,8,512]{2,1,0:T(8,128)}', space=vmem, size = 0x20000, scoped, tag = 'scratch operand']
  #allocation3 [shape = 'f32[8,128]{1,0:T(8,128)}', space=vmem, size = 0x1000, scoped, tag = 'scratch operand']
  #allocation4 [shape = 'f32[8,128]{1,0:T(8,128)}', space=vmem, size = 0x1000, scoped, tag = 'scratch operand']
  %s0 = inlined_call_operand.hbm [shape: bf16[8,16,32], index: 0, kind: input, shape index: {}]
  %s1 = inlined_call_operand.hbm [shape: bf16[32,512], index: 1, kind: input, shape index: {}]
  %s2 = inlined_call_operand.hbm [shape: bf16[128,512], index: 2, kind: input, shape index: {}]
  %s3 = inlined_call_operand.vmem [shape: f32[1,512], index: 3, kind: input, shape index: {}]
  %s4 = inlined_call_operand.hbm [shape: f32[16,128], index: 4, kind: output, shape index: {}]
  %s5 = sld [smem:[#allocation0]]
  $region69: #{tpu_custom_call.1} parent=0
    _
  %s7 = ssub.s32 1, %s5
  %s8 = scalar_select 0, %s7, %s5
  $region1: #{tpu_custom_call.1} parent=0
    #allocation5 [shape = 'u8[32768]{0}', space=vmem, size = 0x8000, scoped, tag = 'input window, operand 0']
    #allocation6 [shape = 's32[2]{0}', space=sflag, size = 0x8, scoped, tag = 'scoped memory for tpu_custom_call.1']
    #allocation7 [shape = 's32[2]{0}', space=sflag, size = 0x8, scoped, tag = 'scoped memory for tpu_custom_call.1']
    #allocation8 [shape = 'u8[32768]{0}', space=vmem, size = 0x8000, scoped, tag = 'input window, operand 1, single buffered']
    #allocation9 [shape = 's32[1]{0}', space=sflag, size = 0x4, scoped, tag = 'scoped memory for tpu_custom_call.1']
    #allocation10 [shape = 'u8[131072]{0}', space=vmem, size = 0x20000, scoped, tag = 'input window, operand 2, single buffered']
    #allocation11 [shape = 'u8[8192]{0}', space=vmem, size = 0x2000, scoped, tag = 'output window, operand 0']
    %9 = vsyncpa [#allocation6], 0
    %s10 = scalar_lea.sflag [#allocation6], 1
    %11 = vsyncpa %s10, 0
    %12 = vsyncpa [#allocation9], 0
    %13 = vsyncpa [#allocation7], 0
    %s14 = scalar_lea.sflag [#allocation7], 1
    %15 = vsyncpa %s14, 0
    loop: start=0, step=1, limit=4
    $region2: #{tpu_custom_call.1} parent=1 // loop_pre_header
      _
    $region3: #{tpu_custom_call.1} parent=1 // loop_header
      %s17 = sphi 0, %s21
      %p18 = scmp.ge.s32.totalorder %s17, 4
      %s24 = sphi 0, %s36
      %s25 = sphi 0, %s32
      %s26 = sphi 0, %s24
      %s27 = sphi 0, %s25
      %s28 = sphi 0, %s26
      %s29 = sphi 0, %s27
      %s41 = sphi 0, %s43
      %s44 = sphi 0, %s41
      %s45 = sphi 0, %s44
      %s61 = sphi 0, %s45
      %s65 = sphi 0, %s65
      %s67 = sphi 0, %s65
      %s68 = sphi 0, %s67
      %s82 = sphi 0, %s68
      %s86 = sphi 0, %s86
      %s88 = sphi 0, %s86
      %s89 = sphi 0, %s88
      %s103 = sphi 0, %s89
      %s107 = sphi 0, %s107
      %s109 = sphi 0, %s107
      %s110 = sphi 0, %s109
      %s124 = sphi 0, %s110
      %s130 = sphi 0, %s132
      %s133 = sphi 0, %s130
      %s134 = sphi 0, %s133
      %s150 = sphi 0, %s134
    $region4: #{tpu_custom_call.1} parent=1 // loop_header_branch
      %20 = sbr.rel (%p18) target = $region8
    $region5: #{tpu_custom_call.1} parent=1 // loop_body
      %s22 = ssub.s32 %s17, 1
      %s23 = ssub.s32 %s17, 2
      %s30 = sadd.s32 1, %s25
      %p31 = scmp.ge.s32.totalorder %s30, 1
      %s32 = scalar_select %p31, 0, %s30
      %s33 = sadd.s32 1, %s24
      %s34 = scalar_select %p31, %s33, %s24
      %p35 = scmp.ge.s32.totalorder %s34, 2
      %s36 = scalar_select %p35, 0, %s34
      %s37 = ssub.s32 %s25, %s32
      %s38 = ssub.s32 %s24, %s36
      %s39 = sor.u32 %s37, %s38
      %p40 = scmp.eq.s32.totalorder %s39, 0
      %s42 = sadd.s32 %s41, 1
      %s43 = scalar_select %p40, %s41, %s42
      %p46 = pneg %p40
      %p47 = scmp.eq.s32.totalorder %s17, 1
      %p48 = por %p46, %p47
      %p49 = scmp.ne.s32.totalorder %s41, %s44
      %p50 = scmp.eq.s32.totalorder %s17, 0
      %p51 = por %p49, %p50
      %p52 = scmp.ne.s32.totalorder %s41, %s44
      %p53 = scmp.eq.s32.totalorder %s22, 1
      %p54 = por %p52, %p53
      %p55 = scmp.ne.s32.totalorder %s44, %s45
      %p56 = scmp.eq.s32.totalorder %s22, 0
      %p57 = por %p55, %p56
      %p58 = scmp.ne.s32.totalorder %s44, %s45
      %p59 = scmp.eq.s32.totalorder %s23, 1
      %p60 = por %p58, %p59
      %p62 = scmp.ne.s32.totalorder %s45, %s61
      %p63 = scmp.eq.s32.totalorder %s23, 0
      %p64 = por %p62, %p63
      %s66 = sadd.s32 %s65, 1
      %p69 = scmp.eq.s32.totalorder %s17, 1
      %p70 = scmp.ne.s32.totalorder %s65, %s67
      %p71 = scmp.eq.s32.totalorder %s17, 0
      %p72 = por %p70, %p71
      %p73 = scmp.ne.s32.totalorder %s65, %s67
      %p74 = scmp.eq.s32.totalorder %s22, 1
      %p75 = por %p73, %p74
      %p76 = scmp.ne.s32.totalorder %s67, %s68
      %p77 = scmp.eq.s32.totalorder %s22, 0
      %p78 = por %p76, %p77
      %p79 = scmp.ne.s32.totalorder %s67, %s68
      %p80 = scmp.eq.s32.totalorder %s23, 1
      %p81 = por %p79, %p80
      %p83 = scmp.ne.s32.totalorder %s68, %s82
      %p84 = scmp.eq.s32.totalorder %s23, 0
      %p85 = por %p83, %p84
      %s87 = sadd.s32 %s86, 1
      %p90 = scmp.eq.s32.totalorder %s17, 1
      %p91 = scmp.ne.s32.totalorder %s86, %s88
      %p92 = scmp.eq.s32.totalorder %s17, 0
      %p93 = por %p91, %p92
      %p94 = scmp.ne.s32.totalorder %s86, %s88
      %p95 = scmp.eq.s32.totalorder %s22, 1
      %p96 = por %p94, %p95
      %p97 = scmp.ne.s32.totalorder %s88, %s89
      %p98 = scmp.eq.s32.totalorder %s22, 0
      %p99 = por %p97, %p98
      %p100 = scmp.ne.s32.totalorder %s88, %s89
      %p101 = scmp.eq.s32.totalorder %s23, 1
      %p102 = por %p100, %p101
      %p104 = scmp.ne.s32.totalorder %s89, %s103
      %p105 = scmp.eq.s32.totalorder %s23, 0
      %p106 = por %p104, %p105
      %s108 = sadd.s32 %s107, 1
      %p111 = scmp.eq.s32.totalorder %s17, 1
      %p112 = scmp.ne.s32.totalorder %s107, %s109
      %p113 = scmp.eq.s32.totalorder %s17, 0
      %p114 = por %p112, %p113
      %p115 = scmp.ne.s32.totalorder %s107, %s109
      %p116 = scmp.eq.s32.totalorder %s22, 1
      %p117 = por %p115, %p116
      %p118 = scmp.ne.s32.totalorder %s109, %s110
      %p119 = scmp.eq.s32.totalorder %s22, 0
      %p120 = por %p118, %p119
      %p121 = scmp.ne.s32.totalorder %s109, %s110
      %p122 = scmp.eq.s32.totalorder %s23, 1
      %p123 = por %p121, %p122
      %p125 = scmp.ne.s32.totalorder %s110, %s124
      %p126 = scmp.eq.s32.totalorder %s23, 0
      %p127 = por %p125, %p126
      %s128 = ssub.s32 %s24, %s36
      %p129 = scmp.eq.s32.totalorder %s128, 0
      %s131 = sadd.s32 %s130, 1
      %s132 = scalar_select %p129, %s130, %s131
      %p135 = pneg %p129
      %p136 = scmp.eq.s32.totalorder %s17, 1
      %p137 = por %p135, %p136
      %p138 = scmp.ne.s32.totalorder %s130, %s133
      %p139 = scmp.eq.s32.totalorder %s17, 0
      %p140 = por %p138, %p139
      %p141 = scmp.ne.s32.totalorder %s130, %s133
      %p142 = scmp.eq.s32.totalorder %s22, 1
      %p143 = por %p141, %p142
      %p144 = scmp.ne.s32.totalorder %s133, %s134
      %p145 = scmp.eq.s32.totalorder %s22, 0
      %p146 = por %p144, %p145
      %p147 = scmp.ne.s32.totalorder %s133, %s134
      %p148 = scmp.eq.s32.totalorder %s23, 1
      %p149 = por %p147, %p148
      %p151 = scmp.ne.s32.totalorder %s134, %s150
      %p152 = scmp.eq.s32.totalorder %s23, 0
      %p153 = por %p151, %p152
      %p154 = scmp.le.s32.totalorder 1, %s17
      %p155 = scmp.lt.s32.totalorder %s17, 3
      %p156 = pnand %p154, %p155
      %p157 = pneg %p156
      // Predicated region
      $region9: #{tpu_custom_call.1} parent=5 // pred_check
        _
      $region10: #{tpu_custom_call.1} parent=5 // pred_check_branch
        %159 = sbr.rel (%p156) target = $region12
      $region11: #{tpu_custom_call.1} parent=5 // pred_region
        %s160 = ssub.s32 %s17, 1
        // Predicated region
        $region13: #{tpu_custom_call.1} parent=11 // pred_check
          %p161 = pneg %p78
        $region14: #{tpu_custom_call.1} parent=11 // pred_check_branch
          %163 = sbr.rel (%p161) target = $region16
        $region15: #{tpu_custom_call.1} parent=11 // pred_region
          %s165 = ssub.s32 1024, 1024
          %166 = vsyncadd [#allocation9], %s165
          %s167 = sshll.u32 [#allocation8], 4
          %s168 = int_to_ptr.vmem [resolvable:$true] %s167
          %173 = dma.hbm_to_vmem [thread:$0]  %s1, 1024, %s168, [#allocation9], 256, 256, 16
        $region16: #{tpu_custom_call.1} parent=11 // pred_fallthru
          _
        // Predicated region
        $region17: #{tpu_custom_call.1} parent=11 // pred_check
          %p174 = pneg %p99
        $region18: #{tpu_custom_call.1} parent=11 // pred_check_branch
          %176 = sbr.rel (%p174) target = $region20
        $region19: #{tpu_custom_call.1} parent=11 // pred_region
          %s178 = ssub.s32 4096, 4096
          %179 = vsyncadd [#allocation9], %s178
          %s180 = sshll.u32 [#allocation10], 4
          %s181 = int_to_ptr.vmem [resolvable:$true] %s180
          %186 = dma.hbm_to_vmem [thread:$0]  %s2, 4096, %s181, [#allocation9], 256, 256, 16
        $region20: #{tpu_custom_call.1} parent=11 // pred_fallthru
          _
        // Predicated region
        $region21: #{tpu_custom_call.1} parent=11 // pred_check
          %p187 = pneg %p120
        $region22: #{tpu_custom_call.1} parent=11 // pred_check_branch
          %189 = sbr.rel (%p187) target = $region24
        $region23: #{tpu_custom_call.1} parent=11 // pred_region
          _
        $region24: #{tpu_custom_call.1} parent=11 // pred_fallthru
          _
      $region12: #{tpu_custom_call.1} parent=5 // pred_fallthru
        _
      %p190 = scmp.lt.s32.totalorder %s17, 2
      // Predicated region
      $region25: #{tpu_custom_call.1} parent=5 // pred_check
        %p191 = pneg %p190
      $region26: #{tpu_custom_call.1} parent=5 // pred_check_branch
        %193 = sbr.rel (%p191) target = $region28
      $region27: #{tpu_custom_call.1} parent=5 // pred_region
        // Predicated region
        $region29: #{tpu_custom_call.1} parent=27 // pred_check
          %p194 = pneg %p51
        $region30: #{tpu_custom_call.1} parent=27 // pred_check_branch
          %196 = sbr.rel (%p194) target = $region32
        $region31: #{tpu_custom_call.1} parent=27 // pred_region
          %s197 = sand.u32 %s41, 1
          %s198 = scalar_lea.sflag [#allocation6], %s197
          %s199 = sand.u32 %s41, 1
          %s200 = smul.addr %s199, 32
          %s201 = scalar_lea.vmem [#allocation5], %s200
          %s202 = smul.u32 8, %s25
          %s204 = ssub.s32 512, 512
          %205 = vsyncadd %s198, %s204
          %s206 = smul.addr %s202, 2
          %s207 = sadd.s32 %s24, %s206
          %s208 = smul.addr %s207, 64
          %s209 = scalar_lea.hbm %s0, %s208
          %s210 = sshll.u32 %s201, 4
          %s211 = int_to_ptr.vmem [resolvable:$true] %s210
          %216 = dma.hbm_to_vmem [thread:$0]  %s209, 512, %s211, %s198, 128, 64, 4
        $region32: #{tpu_custom_call.1} parent=27 // pred_fallthru
          _
      $region28: #{tpu_custom_call.1} parent=5 // pred_fallthru
        _
      %p217 = scmp.le.s32.totalorder 1, %s17
      %p218 = scmp.lt.s32.totalorder %s17, 3
      %p219 = pnand %p217, %p218
      %p220 = pneg %p219
      // Predicated region
      $region33: #{tpu_custom_call.1} parent=5 // pred_check
        _
      $region34: #{tpu_custom_call.1} parent=5 // pred_check_branch
        %222 = sbr.rel (%p219) target = $region36
      $region35: #{tpu_custom_call.1} parent=5 // pred_region
        %s223 = ssub.s32 %s17, 1
        %s224 = sand.u32 %s44, 1
        %s225 = scalar_lea.sflag [#allocation6], %s224
        %s226 = sand.u32 %s44, 1
        %s227 = smul.addr %s226, 32
        %s228 = scalar_lea.vmem [#allocation5], %s227
        // Predicated region
        $region37: #{tpu_custom_call.1} parent=35 // pred_check
          %p229 = pneg %p57
        $region38: #{tpu_custom_call.1} parent=35 // pred_check_branch
          %231 = sbr.rel (%p229) target = $region40
        $region39: #{tpu_custom_call.1} parent=35 // pred_region
          %232 = dma.done %s225, 512
        $region40: #{tpu_custom_call.1} parent=35 // pred_fallthru
          _
        // Predicated region
        $region41: #{tpu_custom_call.1} parent=35 // pred_check
          %p233 = pneg %p78
        $region42: #{tpu_custom_call.1} parent=35 // pred_check_branch
          %235 = sbr.rel (%p233) target = $region44
        $region43: #{tpu_custom_call.1} parent=35 // pred_region
          %236 = dma.done [#allocation9], 1024
        $region44: #{tpu_custom_call.1} parent=35 // pred_fallthru
          _
        // Predicated region
        $region45: #{tpu_custom_call.1} parent=35 // pred_check
          %p237 = pneg %p99
        $region46: #{tpu_custom_call.1} parent=35 // pred_check_branch
          %239 = sbr.rel (%p237) target = $region48
        $region47: #{tpu_custom_call.1} parent=35 // pred_region
          %240 = dma.done [#allocation9], 4096
        $region48: #{tpu_custom_call.1} parent=35 // pred_fallthru
          _
        %s241 = sand.u32 %s44, 1
        %s242 = scalar_lea.sflag [#allocation6], %s241
        %s243 = sand.u32 %s44, 1
        %s244 = smul.addr %s243, 32
        %s245 = scalar_lea.vmem [#allocation5], %s244
        %p246 = pneg %p57
        %p247 = pneg %p54
        %p248 = pneg %p78
        %p249 = pneg %p75
        %p250 = pneg %p99
        %p251 = pneg %p96
        %p252 = pneg %p120
        %p253 = pneg %p117
        %p254 = pneg %p146
        %p255 = pneg %p143
        %s256 = sand.u32 %s133, 1
        %s257 = scalar_lea.sflag [#allocation7], %s256
        %s258 = sand.u32 %s133, 1
        %s259 = smul.addr %s258, 8
        %s260 = scalar_lea.vmem [#allocation11], %s259
        %s261 = smul.u32 8, %s27
        %p263 = scmp.eq.s32.totalorder %s27, 0
        // Predicated region
        $region49: #{tpu_custom_call.1} parent=35 // pred_check
          %p264 = pneg %p263
        $region50: #{tpu_custom_call.1} parent=35 // pred_check_branch
          %266 = sbr.rel (%p264) target = $region52
        $region51: #{tpu_custom_call.1} parent=35 // pred_region
          %267 = vst [vmem:[#allocation3] sm:$0xff] 0.0
          %268 = vst [vmem:[#allocation4] sm:$0xff] 0.0
        $region52: #{tpu_custom_call.1} parent=35 // pred_fallthru
          _
        %v269 = vld [vmem:[%s228] sm:$0xf]
        %v270 = vld [vmem:[%s228 + $0x4] sm:$0xf]
        %v271 = vld [vmem:[%s228 + $0x8] sm:$0xf]
        %v272 = vld [vmem:[%s228 + $0xc] sm:$0xf]
        %v273 = vld [vmem:[%s228 + $0x10] sm:$0xf]
        %v274 = vld [vmem:[%s228 + $0x14] sm:$0xf]
        %v275 = vld [vmem:[%s228 + $0x18] sm:$0xf]
        %v276 = vld [vmem:[%s228 + $0x1c] sm:$0xf]
        %v277 = vld [vmem:[#allocation8] sm:$0xff]
        %v278 = vld [vmem:[#allocation8 + $0x8] sm:$0xff]
        %v279 = vld [vmem:[#allocation8 + $0x10] sm:$0xff]
        %v280 = vld [vmem:[#allocation8 + $0x18] sm:$0xff]
        %v281 = vld [vmem:[#allocation8 + $0x20] sm:$0xff]
        %v282 = vld [vmem:[#allocation8 + $0x28] sm:$0xff]
        %v283 = vld [vmem:[#allocation8 + $0x30] sm:$0xff]
        %v284 = vld [vmem:[#allocation8 + $0x38] sm:$0xff]
        %v285 = vld [vmem:[%s3] sm:$0xf]
        %v287 = vlaneseq
        %v288 = vshrl.u32 %v287, 7
        %v289 = vsub.s32 0, %v288
        %v290 = vrot.slane %v285, %v289
        %v291 = vlaneseq
        %v292 = vshrl.u32 %v291, 7
        %v293 = vsub.s32 1, %v292
        %v294 = vrot.slane %v285, %v293
        %v295 = vlaneseq
        %v296 = vshrl.u32 %v295, 7
        %v297 = vsub.s32 2, %v296
        %v298 = vrot.slane %v285, %v297
        %v299 = vlaneseq
        %v300 = vshrl.u32 %v299, 7
        %v301 = vsub.s32 3, %v300
        %v302 = vrot.slane %v285, %v301
        %v315 = vunpack.c.l.b16 %v269
        %v316 = vunpack.c.l.b16 %v270
        %v317 = vunpack.c.l.b16 %v271
        %v318 = vunpack.c.l.b16 %v272
        %v319 = vunpack.c.l.b16 %v273
        %v320 = vunpack.c.l.b16 %v274
        %v321 = vunpack.c.l.b16 %v275
        %v322 = vunpack.c.l.b16 %v276
        %v323 = vpack.c.b16 %v316, %v315
        %v324 = vpack.c.b16 %v318, %v317
        %v325 = vpack.c.b16 %v320, %v319
        %v326 = vpack.c.b16 %v322, %v321
        %v335 = vunpack.c.l.b16 %v277
        %v336 = vunpack.c.h.b16 %v277
        %v337 = vunpack.c.l.b16 %v278
        %v338 = vunpack.c.h.b16 %v278
        %v339 = vunpack.c.l.b16 %v279
        %v340 = vunpack.c.h.b16 %v279
        %v341 = vunpack.c.l.b16 %v280
        %v342 = vunpack.c.h.b16 %v280
        %v343 = vunpack.c.l.b16 %v281
        %v344 = vunpack.c.h.b16 %v281
        %v345 = vunpack.c.l.b16 %v282
        %v346 = vunpack.c.h.b16 %v282
        %v347 = vunpack.c.l.b16 %v283
        %v348 = vunpack.c.h.b16 %v283
        %v349 = vunpack.c.l.b16 %v284
        %v350 = vunpack.c.h.b16 %v284
        %v351 = vpack.c.b16 %v339, %v335
        %v352 = vpack.c.b16 %v340, %v336
        %v353 = vpack.c.b16 %v341, %v337
        %v354 = vpack.c.b16 %v342, %v338
        %v355 = vpack.c.b16 %v347, %v343
        %v356 = vpack.c.b16 %v348, %v344
        %v357 = vpack.c.b16 %v349, %v345
        %v358 = vpack.c.b16 %v350, %v346
        %vm367 = vcmask 261120
        %v369 = vsel %vm367, %v323, 0
        %v372 = vsel %vm367, %v324, 0
        %v375 = vsel %vm367, %v325, 0
        %v378 = vsel %vm367, %v326, 0
        %380 = vmatprep.subr.bf16.mxu0 %v352
        %381 = vmatpush1.bf16.msra.mxu0 %v351
        %382 = vmatprep.subr.bf16.mxu0 %v356
        %383 = vmatpush1.bf16.msra.mxu0 %v355
        %384 = vmatprep.subr.bf16.mxu0 0
        %385 = vmatpush1.bf16.msra.mxu0 0
        %386 = vmatprep.subr.bf16.mxu0 0
        %387 = vmatpush1.bf16.msra.mxu0 0
        %388 = vmatprep.subr.bf16.mxu0 0
        %389 = vmatpush1.bf16.msra.mxu0 0
        %390 = vmatprep.subr.bf16.mxu0 0
        %391 = vmatpush1.bf16.msra.mxu0 0
        %392 = vmatprep.subr.bf16.mxu0 0
        %393 = vmatpush1.bf16.msra.mxu0 0
        %394 = vmatprep.subr.bf16.mxu0 0
        %395 = vmatpush1.bf16.msra.mxu0 0
        %396 = vmatprep.subr.bf16.mxu0 0
        %397 = vmatpush1.bf16.msra.mxu0 0
        %398 = vmatprep.subr.bf16.mxu0 0
        %399 = vmatpush1.bf16.msra.mxu0 0
        %400 = vmatprep.subr.bf16.mxu0 0
        %401 = vmatpush1.bf16.msra.mxu0 0
        %402 = vmatprep.subr.bf16.mxu0 0
        %403 = vmatpush1.bf16.msra.mxu0 0
        %404 = vmatprep.subr.bf16.mxu0 0
        %405 = vmatpush1.bf16.msra.mxu0 0
        %406 = vmatprep.subr.bf16.mxu0 0
        %407 = vmatpush1.bf16.msra.mxu0 0
        %408 = vmatprep.subr.bf16.mxu0 0
        %409 = vmatpush1.bf16.msra.mxu0 0
        %410 = vmatprep.subr.bf16.mxu0 0
        %411 = vmatpush1.bf16.msra.mxu0 0
        %412 = vmatprep.mubr.bf16.mxu0 0
        %413 = vmatmul.mubr.bf16.gmra.mrb[0].mxu0 %v369
        %v414 = vpop.f32.mrb[0].mxu0
        %v415 = vadd.f32 %v290, %v414
        %v416 = vpop.f32.mrb[0].mxu0
        %v417 = vadd.f32 %v294, %v416
        %v418 = vpop.f32.mrb[0].mxu0
        %v419 = vadd.f32 %v290, %v418
        %v420 = vpop.f32.mrb[0].mxu0
        %v421 = vadd.f32 %v294, %v420
        %422 = vmatprep.mubr.bf16.mxu0 0
        %423 = vmatmul.mubr.bf16.gmra.mrb[0].mxu0 %v372
        %v424 = vpop.f32.mrb[0].mxu0
        %v425 = vadd.f32 %v290, %v424
        %v426 = vpop.f32.mrb[0].mxu0
        %v427 = vadd.f32 %v294, %v426
        %v428 = vpop.f32.mrb[0].mxu0
        %v429 = vadd.f32 %v290, %v428
        %v430 = vpop.f32.mrb[0].mxu0
        %v431 = vadd.f32 %v294, %v430
        %432 = vmatprep.mubr.bf16.mxu0 0
        %433 = vmatmul.mubr.bf16.gmra.mrb[0].mxu0 %v375
        %v434 = vpop.f32.mrb[0].mxu0
        %v435 = vadd.f32 %v290, %v434
        %v436 = vpop.f32.mrb[0].mxu0
        %v437 = vadd.f32 %v294, %v436
        %v438 = vpop.f32.mrb[0].mxu0
        %v439 = vadd.f32 %v290, %v438
        %v440 = vpop.f32.mrb[0].mxu0
        %v441 = vadd.f32 %v294, %v440
        %442 = vmatprep.mubr.bf16.mxu0 0
        %443 = vmatmul.mubr.bf16.gmra.mrb[0].mxu0 %v378
        %v444 = vpop.f32.mrb[0].mxu0
        %v445 = vadd.f32 %v290, %v444
        %v446 = vpop.f32.mrb[0].mxu0
        %v447 = vadd.f32 %v294, %v446
        %v448 = vpop.f32.mrb[0].mxu0
        %v449 = vadd.f32 %v290, %v448
        %v450 = vpop.f32.mrb[0].mxu0
        %v451 = vadd.f32 %v294, %v450
        %452 = vdwg.mxu0
        %453 = vmatprep.subr.bf16.mxu0 %v354
        %454 = vmatpush1.bf16.msra.mxu0 %v353
        %455 = vmatprep.subr.bf16.mxu0 %v358
        %456 = vmatpush1.bf16.msra.mxu0 %v357
        %457 = vmatprep.subr.bf16.mxu0 0
        %458 = vmatpush1.bf16.msra.mxu0 0
        %459 = vmatprep.subr.bf16.mxu0 0
        %460 = vmatpush1.bf16.msra.mxu0 0
        %461 = vmatprep.subr.bf16.mxu0 0
        %462 = vmatpush1.bf16.msra.mxu0 0
        %463 = vmatprep.subr.bf16.mxu0 0
        %464 = vmatpush1.bf16.msra.mxu0 0
        %465 = vmatprep.subr.bf16.mxu0 0
        %466 = vmatpush1.bf16.msra.mxu0 0
        %467 = vmatprep.subr.bf16.mxu0 0
        %468 = vmatpush1.bf16.msra.mxu0 0
        %469 = vmatprep.subr.bf16.mxu0 0
        %470 = vmatpush1.bf16.msra.mxu0 0
        %471 = vmatprep.subr.bf16.mxu0 0
        %472 = vmatpush1.bf16.msra.mxu0 0
        %473 = vmatprep.subr.bf16.mxu0 0
        %474 = vmatpush1.bf16.msra.mxu0 0
        %475 = vmatprep.subr.bf16.mxu0 0
        %476 = vmatpush1.bf16.msra.mxu0 0
        %477 = vmatprep.subr.bf16.mxu0 0
        %478 = vmatpush1.bf16.msra.mxu0 0
        %479 = vmatprep.subr.bf16.mxu0 0
        %480 = vmatpush1.bf16.msra.mxu0 0
        %481 = vmatprep.subr.bf16.mxu0 0
        %482 = vmatpush1.bf16.msra.mxu0 0
        %483 = vmatprep.subr.bf16.mxu0 0
        %484 = vmatpush1.bf16.msra.mxu0 0
        %485 = vmatprep.mubr.bf16.mxu0 0
        %486 = vmatmul.mubr.bf16.gmra.mrb[0].mxu0 %v369
        %v487 = vpop.f32.mrb[0].mxu0
        %v488 = vadd.f32 %v298, %v487
        %v489 = vpop.f32.mrb[0].mxu0
        %v490 = vadd.f32 %v302, %v489
        %v491 = vpop.f32.mrb[0].mxu0
        %v492 = vadd.f32 %v298, %v491
        %v493 = vpop.f32.mrb[0].mxu0
        %v494 = vadd.f32 %v302, %v493
        %495 = vmatprep.mubr.bf16.mxu0 0
        %496 = vmatmul.mubr.bf16.gmra.mrb[0].mxu0 %v372
        %v497 = vpop.f32.mrb[0].mxu0
        %v498 = vadd.f32 %v298, %v497
        %v499 = vpop.f32.mrb[0].mxu0
        %v500 = vadd.f32 %v302, %v499
        %v501 = vpop.f32.mrb[0].mxu0
        %v502 = vadd.f32 %v298, %v501
        %v503 = vpop.f32.mrb[0].mxu0
        %v504 = vadd.f32 %v302, %v503
        %505 = vmatprep.mubr.bf16.mxu0 0
        %506 = vmatmul.mubr.bf16.gmra.mrb[0].mxu0 %v375
        %v507 = vpop.f32.mrb[0].mxu0
        %v508 = vadd.f32 %v298, %v507
        %v509 = vpop.f32.mrb[0].mxu0
        %v510 = vadd.f32 %v302, %v509
        %v511 = vpop.f32.mrb[0].mxu0
        %v512 = vadd.f32 %v298, %v511
        %v513 = vpop.f32.mrb[0].mxu0
        %v514 = vadd.f32 %v302, %v513
        %515 = vmatprep.mubr.bf16.mxu0 0
        %516 = vmatmul.mubr.bf16.gmra.mrb[0].mxu0 %v378
        %v517 = vpop.f32.mrb[0].mxu0
        %v518 = vadd.f32 %v298, %v517
        %v519 = vpop.f32.mrb[0].mxu0
        %v520 = vadd.f32 %v302, %v519
        %v521 = vpop.f32.mrb[0].mxu0
        %v522 = vadd.f32 %v298, %v521
        %v523 = vpop.f32.mrb[0].mxu0
        %v524 = vadd.f32 %v302, %v523
        %525 = vdwg.mxu0
        %526 = vst [vmem:[#allocation2] sm:$0xff] %v415
        %527 = vst [vmem:[#allocation2 + $0x8] sm:$0xff] %v417
        %528 = vst [vmem:[#allocation2 + $0x10] sm:$0xff] %v488
        %529 = vst [vmem:[#allocation2 + $0x18] sm:$0xff] %v490
        %530 = vst [vmem:[#allocation2 + $0x20] sm:$0xff] %v419
        %531 = vst [vmem:[#allocation2 + $0x28] sm:$0xff] %v421
        %532 = vst [vmem:[#allocation2 + $0x30] sm:$0xff] %v492
        %533 = vst [vmem:[#allocation2 + $0x38] sm:$0xff] %v494
        %534 = vst [vmem:[#allocation2 + $0x40] sm:$0xff] %v425
        %535 = vst [vmem:[#allocation2 + $0x48] sm:$0xff] %v427
        %536 = vst [vmem:[#allocation2 + $0x50] sm:$0xff] %v498
        %537 = vst [vmem:[#allocation2 + $0x58] sm:$0xff] %v500
        %538 = vst [vmem:[#allocation2 + $0x60] sm:$0xff] %v429
        %539 = vst [vmem:[#allocation2 + $0x68] sm:$0xff] %v431
        %540 = vst [vmem:[#allocation2 + $0x70] sm:$0xff] %v502
        %541 = vst [vmem:[#allocation2 + $0x78] sm:$0xff] %v504
        %542 = vst [vmem:[#allocation2 + $0x80] sm:$0xff] %v435
        %543 = vst [vmem:[#allocation2 + $0x88] sm:$0xff] %v437
        %544 = vst [vmem:[#allocation2 + $0x90] sm:$0xff] %v508
        %545 = vst [vmem:[#allocation2 + $0x98] sm:$0xff] %v510
        %546 = vst [vmem:[#allocation2 + $0xa0] sm:$0xff] %v439
        %547 = vst [vmem:[#allocation2 + $0xa8] sm:$0xff] %v441
        %548 = vst [vmem:[#allocation2 + $0xb0] sm:$0xff] %v512
        %549 = vst [vmem:[#allocation2 + $0xb8] sm:$0xff] %v514
        %550 = vst [vmem:[#allocation2 + $0xc0] sm:$0xff] %v445
        %551 = vst [vmem:[#allocation2 + $0xc8] sm:$0xff] %v447
        %552 = vst [vmem:[#allocation2 + $0xd0] sm:$0xff] %v518
        %553 = vst [vmem:[#allocation2 + $0xd8] sm:$0xff] %v520
        %554 = vst [vmem:[#allocation2 + $0xe0] sm:$0xff] %v449
        %555 = vst [vmem:[#allocation2 + $0xe8] sm:$0xff] %v451
        %556 = vst [vmem:[#allocation2 + $0xf0] sm:$0xff] %v522
        %557 = vst [vmem:[#allocation2 + $0xf8] sm:$0xff] %v524
        %v558 = vld [vmem:[#allocation10] sm:$0xff]
        %v559 = vld [vmem:[#allocation10 + $0x8] sm:$0xff]
        %v560 = vld [vmem:[#allocation10 + $0x10] sm:$0xff]
        %v561 = vld [vmem:[#allocation10 + $0x18] sm:$0xff]
        %v562 = vld [vmem:[#allocation10 + $0x20] sm:$0xff]
        %v563 = vld [vmem:[#allocation10 + $0x28] sm:$0xff]
        %v564 = vld [vmem:[#allocation10 + $0x30] sm:$0xff]
        %v565 = vld [vmem:[#allocation10 + $0x38] sm:$0xff]
        %v566 = vld [vmem:[#allocation10 + $0x40] sm:$0xff]
        %v567 = vld [vmem:[#allocation10 + $0x48] sm:$0xff]
        %v568 = vld [vmem:[#allocation10 + $0x50] sm:$0xff]
        %v569 = vld [vmem:[#allocation10 + $0x58] sm:$0xff]
        %v570 = vld [vmem:[#allocation10 + $0x60] sm:$0xff]
        %v571 = vld [vmem:[#allocation10 + $0x68] sm:$0xff]
        %v572 = vld [vmem:[#allocation10 + $0x70] sm:$0xff]
        %v573 = vld [vmem:[#allocation10 + $0x78] sm:$0xff]
        %v574 = vld [vmem:[#allocation10 + $0x80] sm:$0xff]
        %v575 = vld [vmem:[#allocation10 + $0x88] sm:$0xff]
        %v576 = vld [vmem:[#allocation10 + $0x90] sm:$0xff]
        %v577 = vld [vmem:[#allocation10 + $0x98] sm:$0xff]
        %v578 = vld [vmem:[#allocation10 + $0xa0] sm:$0xff]
        %v579 = vld [vmem:[#allocation10 + $0xa8] sm:$0xff]
        %v580 = vld [vmem:[#allocation10 + $0xb0] sm:$0xff]
        %v581 = vld [vmem:[#allocation10 + $0xb8] sm:$0xff]
        %v582 = vld [vmem:[#allocation10 + $0xc0] sm:$0xff]
        %v583 = vld [vmem:[#allocation10 + $0xc8] sm:$0xff]
        %v584 = vld [vmem:[#allocation10 + $0xd0] sm:$0xff]
        %v585 = vld [vmem:[#allocation10 + $0xd8] sm:$0xff]
        %v586 = vld [vmem:[#allocation10 + $0xe0] sm:$0xff]
        %v587 = vld [vmem:[#allocation10 + $0xe8] sm:$0xff]
        %v588 = vld [vmem:[#allocation10 + $0xf0] sm:$0xff]
        %v589 = vld [vmem:[#allocation10 + $0xf8] sm:$0xff]
        %v590 = vld [vmem:[#allocation3] sm:$0xff]
        %v591 = vld [vmem:[#allocation4] sm:$0xff]
        %v592 = vld [vmem:[#allocation2] sm:$0xff]
        %v593 = vld [vmem:[#allocation2 + $0x8] sm:$0xff]
        %v594 = vld [vmem:[#allocation2 + $0x10] sm:$0xff]
        %v595 = vld [vmem:[#allocation2 + $0x18] sm:$0xff]
        %v596 = vpack.c.bf16 %v590, %v590
        %v629 = vunpack.c.l.b16 %v558
        %v630 = vunpack.c.h.b16 %v558
        %v631 = vunpack.c.l.b16 %v559
        %v632 = vunpack.c.h.b16 %v559
        %v633 = vunpack.c.l.b16 %v560
        %v634 = vunpack.c.h.b16 %v560
        %v635 = vunpack.c.l.b16 %v561
        %v636 = vunpack.c.h.b16 %v561
        %v637 = vunpack.c.l.b16 %v562
        %v638 = vunpack.c.h.b16 %v562
        %v639 = vunpack.c.l.b16 %v563
        %v640 = vunpack.c.h.b16 %v563
        %v641 = vunpack.c.l.b16 %v564
        %v642 = vunpack.c.h.b16 %v564
        %v643 = vunpack.c.l.b16 %v565
        %v644 = vunpack.c.h.b16 %v565
        %v645 = vunpack.c.l.b16 %v566
        %v646 = vunpack.c.h.b16 %v566
        %v647 = vunpack.c.l.b16 %v567
        %v648 = vunpack.c.h.b16 %v567
        %v649 = vunpack.c.l.b16 %v568
        %v650 = vunpack.c.h.b16 %v568
        %v651 = vunpack.c.l.b16 %v569
        %v652 = vunpack.c.h.b16 %v569
        %v653 = vunpack.c.l.b16 %v570
        %v654 = vunpack.c.h.b16 %v570
        %v655 = vunpack.c.l.b16 %v571
        %v656 = vunpack.c.h.b16 %v571
        %v657 = vunpack.c.l.b16 %v572
        %v658 = vunpack.c.h.b16 %v572
        %v659 = vunpack.c.l.b16 %v573
        %v660 = vunpack.c.h.b16 %v573
        %v661 = vunpack.c.l.b16 %v574
        %v662 = vunpack.c.h.b16 %v574
        %v663 = vunpack.c.l.b16 %v575
        %v664 = vunpack.c.h.b16 %v575
        %v665 = vunpack.c.l.b16 %v576
        %v666 = vunpack.c.h.b16 %v576
        %v667 = vunpack.c.l.b16 %v577
        %v668 = vunpack.c.h.b16 %v577
        %v669 = vunpack.c.l.b16 %v578
        %v670 = vunpack.c.h.b16 %v578
        %v671 = vunpack.c.l.b16 %v579
        %v672 = vunpack.c.h.b16 %v579
        %v673 = vunpack.c.l.b16 %v580
        %v674 = vunpack.c.h.b16 %v580
        %v675 = vunpack.c.l.b16 %v581
        %v676 = vunpack.c.h.b16 %v581
        %v677 = vunpack.c.l.b16 %v582
        %v678 = vunpack.c.h.b16 %v582
        %v679 = vunpack.c.l.b16 %v583
        %v680 = vunpack.c.h.b16 %v583
        %v681 = vunpack.c.l.b16 %v584
        %v682 = vunpack.c.h.b16 %v584
        %v683 = vunpack.c.l.b16 %v585
        %v684 = vunpack.c.h.b16 %v585
        %v685 = vunpack.c.l.b16 %v586
        %v686 = vunpack.c.h.b16 %v586
        %v687 = vunpack.c.l.b16 %v587
        %v688 = vunpack.c.h.b16 %v587
        %v689 = vunpack.c.l.b16 %v588
        %v690 = vunpack.c.h.b16 %v588
        %v691 = vunpack.c.l.b16 %v589
        %v692 = vunpack.c.h.b16 %v589
        %v693 = vpack.c.b16 %v633, %v629
        %v694 = vpack.c.b16 %v634, %v630
        %v695 = vpack.c.b16 %v635, %v631
        %v696 = vpack.c.b16 %v636, %v632
        %v697 = vpack.c.b16 %v641, %v637
        %v698 = vpack.c.b16 %v642, %v638
        %v699 = vpack.c.b16 %v643, %v639
        %v700 = vpack.c.b16 %v644, %v640
        %v701 = vpack.c.b16 %v649, %v645
        %v702 = vpack.c.b16 %v650, %v646
        %v703 = vpack.c.b16 %v651, %v647
        %v704 = vpack.c.b16 %v652, %v648
        %v705 = vpack.c.b16 %v657, %v653
        %v706 = vpack.c.b16 %v658, %v654
        %v707 = vpack.c.b16 %v659, %v655
        %v708 = vpack.c.b16 %v660, %v656
        %v709 = vpack.c.b16 %v665, %v661
        %v710 = vpack.c.b16 %v666, %v662
        %v711 = vpack.c.b16 %v667, %v663
        %v712 = vpack.c.b16 %v668, %v664
        %v713 = vpack.c.b16 %v673, %v669
        %v714 = vpack.c.b16 %v674, %v670
        %v715 = vpack.c.b16 %v675, %v671
        %v716 = vpack.c.b16 %v676, %v672
        %v717 = vpack.c.b16 %v681, %v677
        %v718 = vpack.c.b16 %v682, %v678
        %v719 = vpack.c.b16 %v683, %v679
        %v720 = vpack.c.b16 %v684, %v680
        %v721 = vpack.c.b16 %v689, %v685
        %v722 = vpack.c.b16 %v690, %v686
        %v723 = vpack.c.b16 %v691, %v687
        %v724 = vpack.c.b16 %v692, %v688
        %757 = vmatprep.subr.bf16.mxu0 %v694
        %758 = vmatpush1.bf16.msra.mxu0 %v693
        %759 = vmatprep.subr.bf16.mxu0 %v698
        %760 = vmatpush1.bf16.msra.mxu0 %v697
        %761 = vmatprep.subr.bf16.mxu0 %v702
        %762 = vmatpush1.bf16.msra.mxu0 %v701
        %763 = vmatprep.subr.bf16.mxu0 %v706
        %764 = vmatpush1.bf16.msra.mxu0 %v705
        %765 = vmatprep.subr.bf16.mxu0 %v710
        %766 = vmatpush1.bf16.msra.mxu0 %v709
        %767 = vmatprep.subr.bf16.mxu0 %v714
        %768 = vmatpush1.bf16.msra.mxu0 %v713
        %769 = vmatprep.subr.bf16.mxu0 %v718
        %770 = vmatpush1.bf16.msra.mxu0 %v717
        %771 = vmatprep.subr.bf16.mxu0 %v722
        %772 = vmatpush1.bf16.msra.mxu0 %v721
        %773 = vmatprep.subr.bf16.mxu0 0
        %774 = vmatpush1.bf16.msra.mxu0 0
        %775 = vmatprep.subr.bf16.mxu0 0
        %776 = vmatpush1.bf16.msra.mxu0 0
        %777 = vmatprep.subr.bf16.mxu0 0
        %778 = vmatpush1.bf16.msra.mxu0 0
        %779 = vmatprep.subr.bf16.mxu0 0
        %780 = vmatpush1.bf16.msra.mxu0 0
        %781 = vmatprep.subr.bf16.mxu0 0
        %782 = vmatpush1.bf16.msra.mxu0 0
        %783 = vmatprep.subr.bf16.mxu0 0
        %784 = vmatpush1.bf16.msra.mxu0 0
        %785 = vmatprep.subr.bf16.mxu0 0
        %786 = vmatpush1.bf16.msra.mxu0 0
        %787 = vmatprep.subr.bf16.mxu0 0
        %788 = vmatpush1.bf16.msra.mxu0 0
        %789 = vmatprep.mubr.bf16.mxu0 0
        %790 = vmatmul.mubr.bf16.gmra.mrb[0].mxu0 %v596
        %v791 = vpop.f32.mrb[0].mxu0
        %v792 = vadd.f32 0.0, %v791
        %v793 = vpop.f32.mrb[0].mxu0
        %v794 = vadd.f32 0.0, %v793
        %v795 = vpop.f32.mrb[0].mxu0
        %v796 = vpop.f32.mrb[0].mxu0
        %797 = vdwg.mxu0
        %798 = vmatprep.subr.bf16.mxu0 %v696
        %799 = vmatpush1.bf16.msra.mxu0 %v695
        %800 = vmatprep.subr.bf16.mxu0 %v700
        %801 = vmatpush1.bf16.msra.mxu0 %v699
        %802 = vmatprep.subr.bf16.mxu0 %v704
        %803 = vmatpush1.bf16.msra.mxu0 %v703
        %804 = vmatprep.subr.bf16.mxu0 %v708
        %805 = vmatpush1.bf16.msra.mxu0 %v707
        %806 = vmatprep.subr.bf16.mxu0 %v712
        %807 = vmatpush1.bf16.msra.mxu0 %v711
        %808 = vmatprep.subr.bf16.mxu0 %v716
        %809 = vmatpush1.bf16.msra.mxu0 %v715
        %810 = vmatprep.subr.bf16.mxu0 %v720
        %811 = vmatpush1.bf16.msra.mxu0 %v719
        %812 = vmatprep.subr.bf16.mxu0 %v724
        %813 = vmatpush1.bf16.msra.mxu0 %v723
        %814 = vmatprep.subr.bf16.mxu0 0
        %815 = vmatpush1.bf16.msra.mxu0 0
        %816 = vmatprep.subr.bf16.mxu0 0
        %817 = vmatpush1.bf16.msra.mxu0 0
        %818 = vmatprep.subr.bf16.mxu0 0
        %819 = vmatpush1.bf16.msra.mxu0 0
        %820 = vmatprep.subr.bf16.mxu0 0
        %821 = vmatpush1.bf16.msra.mxu0 0
        %822 = vmatprep.subr.bf16.mxu0 0
        %823 = vmatpush1.bf16.msra.mxu0 0
        %824 = vmatprep.subr.bf16.mxu0 0
        %825 = vmatpush1.bf16.msra.mxu0 0
        %826 = vmatprep.subr.bf16.mxu0 0
        %827 = vmatpush1.bf16.msra.mxu0 0
        %828 = vmatprep.subr.bf16.mxu0 0
        %829 = vmatpush1.bf16.msra.mxu0 0
        %830 = vmatprep.mubr.bf16.mxu0 0
        %831 = vmatmul.mubr.bf16.gmra.mrb[0].mxu0 %v596
        %v832 = vpop.f32.mrb[0].mxu0
        %v833 = vadd.f32 0.0, %v832
        %v834 = vpop.f32.mrb[0].mxu0
        %v835 = vadd.f32 0.0, %v834
        %v836 = vpop.f32.mrb[0].mxu0
        %v837 = vpop.f32.mrb[0].mxu0
        %838 = vdwg.mxu0
        %v839 = vadd.f32 %v592, %v792
        %v840 = vadd.f32 %v593, %v794
        %v841 = vadd.f32 %v594, %v833
        %v842 = vadd.f32 %v595, %v835
        %v843 = vxor.u32 %v839, 2147483648
        %v844 = vmul.f32 %v843, 1.442695
        %v845 = vpow.pop %v844
        %v846 = vadd.f32 %v845, 1.0
        %v847 = vrcp.pop %v846
        %v848 = vmul.f32 1.0, %v847
        %v849 = vxor.u32 %v840, 2147483648
        %v850 = vmul.f32 %v849, 1.442695
        %v851 = vpow.pop %v850
        %v852 = vadd.f32 %v851, 1.0
        %v853 = vrcp.pop %v852
        %v854 = vmul.f32 1.0, %v853
        %v855 = vtanh.pop %v841
        %v856 = vxor.u32 %v842, 2147483648
        %v857 = vmul.f32 %v856, 1.442695
        %v858 = vpow.pop %v857
        %v859 = vadd.f32 %v858, 1.0
        %v860 = vrcp.pop %v859
        %v861 = vmul.f32 1.0, %v860
        %v862 = vmul.f32 %v854, %v591
        %v863 = vmul.f32 %v848, %v855
        %v864 = vadd.f32 %v862, %v863
        %v865 = vtanh.pop %v864
        %v866 = vmul.f32 %v861, %v865
        %s867 = scalar_lea.vmem [#allocation2], 32
        %v868 = vld [vmem:[%s867] sm:$0xff]
        %v869 = vld [vmem:[%s867 + $0x8] sm:$0xff]
        %v870 = vld [vmem:[%s867 + $0x10] sm:$0xff]
        %v871 = vld [vmem:[%s867 + $0x18] sm:$0xff]
        %v872 = vpack.c.bf16 %v866, %v866
        %873 = vmatprep.subr.bf16.mxu0 %v694
        %874 = vmatpush1.bf16.msra.mxu0 %v693
        %875 = vmatprep.subr.bf16.mxu0 %v698
        %876 = vmatpush1.bf16.msra.mxu0 %v697
        %877 = vmatprep.subr.bf16.mxu0 %v702
        %878 = vmatpush1.bf16.msra.mxu0 %v701
        %879 = vmatprep.subr.bf16.mxu0 %v706
        %880 = vmatpush1.bf16.msra.mxu0 %v705
        %881 = vmatprep.subr.bf16.mxu0 %v710
        %882 = vmatpush1.bf16.msra.mxu0 %v709
        %883 = vmatprep.subr.bf16.mxu0 %v714
        %884 = vmatpush1.bf16.msra.mxu0 %v713
        %885 = vmatprep.subr.bf16.mxu0 %v718
        %886 = vmatpush1.bf16.msra.mxu0 %v717
        %887 = vmatprep.subr.bf16.mxu0 %v722
        %888 = vmatpush1.bf16.msra.mxu0 %v721
        %889 = vmatprep.subr.bf16.mxu0 0
        %890 = vmatpush1.bf16.msra.mxu0 0
        %891 = vmatprep.subr.bf16.mxu0 0
        %892 = vmatpush1.bf16.msra.mxu0 0
        %893 = vmatprep.subr.bf16.mxu0 0
        %894 = vmatpush1.bf16.msra.mxu0 0
        %895 = vmatprep.subr.bf16.mxu0 0
        %896 = vmatpush1.bf16.msra.mxu0 0
        %897 = vmatprep.subr.bf16.mxu0 0
        %898 = vmatpush1.bf16.msra.mxu0 0
        %899 = vmatprep.subr.bf16.mxu0 0
        %900 = vmatpush1.bf16.msra.mxu0 0
        %901 = vmatprep.subr.bf16.mxu0 0
        %902 = vmatpush1.bf16.msra.mxu0 0
        %903 = vmatprep.subr.bf16.mxu0 0
        %904 = vmatpush1.bf16.msra.mxu0 0
        %905 = vmatprep.mubr.bf16.mxu0 0
        %906 = vmatmul.mubr.bf16.gmra.mrb[0].mxu0 %v872
        %v907 = vpop.f32.mrb[0].mxu0
        %v908 = vadd.f32 0.0, %v907
        %v909 = vpop.f32.mrb[0].mxu0
        %v910 = vadd.f32 0.0, %v909
        %v911 = vpop.f32.mrb[0].mxu0
        %v912 = vpop.f32.mrb[0].mxu0
        %913 = vdwg.mxu0
        %914 = vmatprep.subr.bf16.mxu0 %v696
        %915 = vmatpush1.bf16.msra.mxu0 %v695
        %916 = vmatprep.subr.bf16.mxu0 %v700
        %917 = vmatpush1.bf16.msra.mxu0 %v699
        %918 = vmatprep.subr.bf16.mxu0 %v704
        %919 = vmatpush1.bf16.msra.mxu0 %v703
        %920 = vmatprep.subr.bf16.mxu0 %v708
        %921 = vmatpush1.bf16.msra.mxu0 %v707
        %922 = vmatprep.subr.bf16.mxu0 %v712
        %923 = vmatpush1.bf16.msra.mxu0 %v711
        %924 = vmatprep.subr.bf16.mxu0 %v716
        %925 = vmatpush1.bf16.msra.mxu0 %v715
        %926 = vmatprep.subr.bf16.mxu0 %v720
        %927 = vmatpush1.bf16.msra.mxu0 %v719
        %928 = vmatprep.subr.bf16.mxu0 %v724
        %929 = vmatpush1.bf16.msra.mxu0 %v723
        %930 = vmatprep.subr.bf16.mxu0 0
        %931 = vmatpush1.bf16.msra.mxu0 0
        %932 = vmatprep.subr.bf16.mxu0 0
        %933 = vmatpush1.bf16.msra.mxu0 0
        %934 = vmatprep.subr.bf16.mxu0 0
        %935 = vmatpush1.bf16.msra.mxu0 0
        %936 = vmatprep.subr.bf16.mxu0 0
        %937 = vmatpush1.bf16.msra.mxu0 0
        %938 = vmatprep.subr.bf16.mxu0 0
        %939 = vmatpush1.bf16.msra.mxu0 0
        %940 = vmatprep.subr.bf16.mxu0 0
        %941 = vmatpush1.bf16.msra.mxu0 0
        %942 = vmatprep.subr.bf16.mxu0 0
        %943 = vmatpush1.bf16.msra.mxu0 0
        %944 = vmatprep.subr.bf16.mxu0 0
        %945 = vmatpush1.bf16.msra.mxu0 0
        %946 = vmatprep.mubr.bf16.mxu0 0
        %947 = vmatmul.mubr.bf16.gmra.mrb[0].mxu0 %v872
        %v948 = vpop.f32.mrb[0].mxu0
        %v949 = vadd.f32 0.0, %v948
        %v950 = vpop.f32.mrb[0].mxu0
        %v951 = vadd.f32 0.0, %v950
        %v952 = vpop.f32.mrb[0].mxu0
        %v953 = vpop.f32.mrb[0].mxu0
        %954 = vdwg.mxu0
        %v955 = vadd.f32 %v868, %v908
        %v956 = vadd.f32 %v869, %v910
        %v957 = vadd.f32 %v870, %v949
        %v958 = vadd.f32 %v871, %v951
        %v959 = vxor.u32 %v955, 2147483648
        %v960 = vmul.f32 %v959, 1.442695
        %v961 = vpow.pop %v960
        %v962 = vadd.f32 %v961, 1.0
        %v963 = vrcp.pop %v962
        %v964 = vmul.f32 1.0, %v963
        %v965 = vxor.u32 %v956, 2147483648
        %v966 = vmul.f32 %v965, 1.442695
        %v967 = vpow.pop %v966
        %v968 = vadd.f32 %v967, 1.0
        %v969 = vrcp.pop %v968
        %v970 = vmul.f32 1.0, %v969
        %v971 = vtanh.pop %v957
        %v972 = vxor.u32 %v958, 2147483648
        %v973 = vmul.f32 %v972, 1.442695
        %v974 = vpow.pop %v973
        %v975 = vadd.f32 %v974, 1.0
        %v976 = vrcp.pop %v975
        %v977 = vmul.f32 1.0, %v976
        %v978 = vmul.f32 %v970, %v864
        %v979 = vmul.f32 %v964, %v971
        %v980 = vadd.f32 %v978, %v979
        %v981 = vtanh.pop %v980
        %v982 = vmul.f32 %v977, %v981
        %s983 = scalar_lea.vmem [#allocation2], 64
        %v984 = vld [vmem:[%s983] sm:$0xff]
        %v985 = vld [vmem:[%s983 + $0x8] sm:$0xff]
        %v986 = vld [vmem:[%s983 + $0x10] sm:$0xff]
        %v987 = vld [vmem:[%s983 + $0x18] sm:$0xff]
        %v988 = vpack.c.bf16 %v982, %v982
        %989 = vmatprep.subr.bf16.mxu0 %v694
        %990 = vmatpush1.bf16.msra.mxu0 %v693
        %991 = vmatprep.subr.bf16.mxu0 %v698
        %992 = vmatpush1.bf16.msra.mxu0 %v697
        %993 = vmatprep.subr.bf16.mxu0 %v702
        %994 = vmatpush1.bf16.msra.mxu0 %v701
        %995 = vmatprep.subr.bf16.mxu0 %v706
        %996 = vmatpush1.bf16.msra.mxu0 %v705
        %997 = vmatprep.subr.bf16.mxu0 %v710
        %998 = vmatpush1.bf16.msra.mxu0 %v709
        %999 = vmatprep.subr.bf16.mxu0 %v714
        %1000 = vmatpush1.bf16.msra.mxu0 %v713
        %1001 = vmatprep.subr.bf16.mxu0 %v718
        %1002 = vmatpush1.bf16.msra.mxu0 %v717
        %1003 = vmatprep.subr.bf16.mxu0 %v722
        %1004 = vmatpush1.bf16.msra.mxu0 %v721
        %1005 = vmatprep.subr.bf16.mxu0 0
        %1006 = vmatpush1.bf16.msra.mxu0 0
        %1007 = vmatprep.subr.bf16.mxu0 0
        %1008 = vmatpush1.bf16.msra.mxu0 0
        %1009 = vmatprep.subr.bf16.mxu0 0
        %1010 = vmatpush1.bf16.msra.mxu0 0
        %1011 = vmatprep.subr.bf16.mxu0 0
        %1012 = vmatpush1.bf16.msra.mxu0 0
        %1013 = vmatprep.subr.bf16.mxu0 0
        %1014 = vmatpush1.bf16.msra.mxu0 0
        %1015 = vmatprep.subr.bf16.mxu0 0
        %1016 = vmatpush1.bf16.msra.mxu0 0
        %1017 = vmatprep.subr.bf16.mxu0 0
        %1018 = vmatpush1.bf16.msra.mxu0 0
        %1019 = vmatprep.subr.bf16.mxu0 0
        %1020 = vmatpush1.bf16.msra.mxu0 0
        %1021 = vmatprep.mubr.bf16.mxu0 0
        %1022 = vmatmul.mubr.bf16.gmra.mrb[0].mxu0 %v988
        %v1023 = vpop.f32.mrb[0].mxu0
        %v1024 = vadd.f32 0.0, %v1023
        %v1025 = vpop.f32.mrb[0].mxu0
        %v1026 = vadd.f32 0.0, %v1025
        %v1027 = vpop.f32.mrb[0].mxu0
        %v1028 = vpop.f32.mrb[0].mxu0
        %1029 = vdwg.mxu0
        %1030 = vmatprep.subr.bf16.mxu0 %v696
        %1031 = vmatpush1.bf16.msra.mxu0 %v695
        %1032 = vmatprep.subr.bf16.mxu0 %v700
        %1033 = vmatpush1.bf16.msra.mxu0 %v699
        %1034 = vmatprep.subr.bf16.mxu0 %v704
        %1035 = vmatpush1.bf16.msra.mxu0 %v703
        %1036 = vmatprep.subr.bf16.mxu0 %v708
        %1037 = vmatpush1.bf16.msra.mxu0 %v707
        %1038 = vmatprep.subr.bf16.mxu0 %v712
        %1039 = vmatpush1.bf16.msra.mxu0 %v711
        %1040 = vmatprep.subr.bf16.mxu0 %v716
        %1041 = vmatpush1.bf16.msra.mxu0 %v715
        %1042 = vmatprep.subr.bf16.mxu0 %v720
        %1043 = vmatpush1.bf16.msra.mxu0 %v719
        %1044 = vmatprep.subr.bf16.mxu0 %v724
        %1045 = vmatpush1.bf16.msra.mxu0 %v723
        %1046 = vmatprep.subr.bf16.mxu0 0
        %1047 = vmatpush1.bf16.msra.mxu0 0
        %1048 = vmatprep.subr.bf16.mxu0 0
        %1049 = vmatpush1.bf16.msra.mxu0 0
        %1050 = vmatprep.subr.bf16.mxu0 0
        %1051 = vmatpush1.bf16.msra.mxu0 0
        %1052 = vmatprep.subr.bf16.mxu0 0
        %1053 = vmatpush1.bf16.msra.mxu0 0
        %1054 = vmatprep.subr.bf16.mxu0 0
        %1055 = vmatpush1.bf16.msra.mxu0 0
        %1056 = vmatprep.subr.bf16.mxu0 0
        %1057 = vmatpush1.bf16.msra.mxu0 0
        %1058 = vmatprep.subr.bf16.mxu0 0
        %1059 = vmatpush1.bf16.msra.mxu0 0
        %1060 = vmatprep.subr.bf16.mxu0 0
        %1061 = vmatpush1.bf16.msra.mxu0 0
        %1062 = vmatprep.mubr.bf16.mxu0 0
        %1063 = vmatmul.mubr.bf16.gmra.mrb[0].mxu0 %v988
        %v1064 = vpop.f32.mrb[0].mxu0
        %v1065 = vadd.f32 0.0, %v1064
        %v1066 = vpop.f32.mrb[0].mxu0
        %v1067 = vadd.f32 0.0, %v1066
        %v1068 = vpop.f32.mrb[0].mxu0
        %v1069 = vpop.f32.mrb[0].mxu0
        %1070 = vdwg.mxu0
        %v1071 = vadd.f32 %v984, %v1024
        %v1072 = vadd.f32 %v985, %v1026
        %v1073 = vadd.f32 %v986, %v1065
        %v1074 = vadd.f32 %v987, %v1067
        %v1075 = vxor.u32 %v1071, 2147483648
        %v1076 = vmul.f32 %v1075, 1.442695
        %v1077 = vpow.pop %v1076
        %v1078 = vadd.f32 %v1077, 1.0
        %v1079 = vrcp.pop %v1078
        %v1080 = vmul.f32 1.0, %v1079
        %v1081 = vxor.u32 %v1072, 2147483648
        %v1082 = vmul.f32 %v1081, 1.442695
        %v1083 = vpow.pop %v1082
        %v1084 = vadd.f32 %v1083, 1.0
        %v1085 = vrcp.pop %v1084
        %v1086 = vmul.f32 1.0, %v1085
        %v1087 = vtanh.pop %v1073
        %v1088 = vxor.u32 %v1074, 2147483648
        %v1089 = vmul.f32 %v1088, 1.442695
        %v1090 = vpow.pop %v1089
        %v1091 = vadd.f32 %v1090, 1.0
        %v1092 = vrcp.pop %v1091
        %v1093 = vmul.f32 1.0, %v1092
        %v1094 = vmul.f32 %v1086, %v980
        %v1095 = vmul.f32 %v1080, %v1087
        %v1096 = vadd.f32 %v1094, %v1095
        %v1097 = vtanh.pop %v1096
        %v1098 = vmul.f32 %v1093, %v1097
        %s1099 = scalar_lea.vmem [#allocation2], 96
        %v1100 = vld [vmem:[%s1099] sm:$0xff]
        %v1101 = vld [vmem:[%s1099 + $0x8] sm:$0xff]
        %v1102 = vld [vmem:[%s1099 + $0x10] sm:$0xff]
        %v1103 = vld [vmem:[%s1099 + $0x18] sm:$0xff]
        %v1104 = vpack.c.bf16 %v1098, %v1098
        %1105 = vmatprep.subr.bf16.mxu0 %v694
        %1106 = vmatpush1.bf16.msra.mxu0 %v693
        %1107 = vmatprep.subr.bf16.mxu0 %v698
        %1108 = vmatpush1.bf16.msra.mxu0 %v697
        %1109 = vmatprep.subr.bf16.mxu0 %v702
        %1110 = vmatpush1.bf16.msra.mxu0 %v701
        %1111 = vmatprep.subr.bf16.mxu0 %v706
        %1112 = vmatpush1.bf16.msra.mxu0 %v705
        %1113 = vmatprep.subr.bf16.mxu0 %v710
        %1114 = vmatpush1.bf16.msra.mxu0 %v709
        %1115 = vmatprep.subr.bf16.mxu0 %v714
        %1116 = vmatpush1.bf16.msra.mxu0 %v713
        %1117 = vmatprep.subr.bf16.mxu0 %v718
        %1118 = vmatpush1.bf16.msra.mxu0 %v717
        %1119 = vmatprep.subr.bf16.mxu0 %v722
        %1120 = vmatpush1.bf16.msra.mxu0 %v721
        %1121 = vmatprep.subr.bf16.mxu0 0
        %1122 = vmatpush1.bf16.msra.mxu0 0
        %1123 = vmatprep.subr.bf16.mxu0 0
        %1124 = vmatpush1.bf16.msra.mxu0 0
        %1125 = vmatprep.subr.bf16.mxu0 0
        %1126 = vmatpush1.bf16.msra.mxu0 0
        %1127 = vmatprep.subr.bf16.mxu0 0
        %1128 = vmatpush1.bf16.msra.mxu0 0
        %1129 = vmatprep.subr.bf16.mxu0 0
        %1130 = vmatpush1.bf16.msra.mxu0 0
        %1131 = vmatprep.subr.bf16.mxu0 0
        %1132 = vmatpush1.bf16.msra.mxu0 0
        %1133 = vmatprep.subr.bf16.mxu0 0
        %1134 = vmatpush1.bf16.msra.mxu0 0
        %1135 = vmatprep.subr.bf16.mxu0 0
        %1136 = vmatpush1.bf16.msra.mxu0 0
        %1137 = vmatprep.mubr.bf16.mxu0 0
        %1138 = vmatmul.mubr.bf16.gmra.mrb[0].mxu0 %v1104
        %v1139 = vpop.f32.mrb[0].mxu0
        %v1140 = vadd.f32 0.0, %v1139
        %v1141 = vpop.f32.mrb[0].mxu0
        %v1142 = vadd.f32 0.0, %v1141
        %v1143 = vpop.f32.mrb[0].mxu0
        %v1144 = vpop.f32.mrb[0].mxu0
        %1145 = vdwg.mxu0
        %1146 = vmatprep.subr.bf16.mxu0 %v696
        %1147 = vmatpush1.bf16.msra.mxu0 %v695
        %1148 = vmatprep.subr.bf16.mxu0 %v700
        %1149 = vmatpush1.bf16.msra.mxu0 %v699
        %1150 = vmatprep.subr.bf16.mxu0 %v704
        %1151 = vmatpush1.bf16.msra.mxu0 %v703
        %1152 = vmatprep.subr.bf16.mxu0 %v708
        %1153 = vmatpush1.bf16.msra.mxu0 %v707
        %1154 = vmatprep.subr.bf16.mxu0 %v712
        %1155 = vmatpush1.bf16.msra.mxu0 %v711
        %1156 = vmatprep.subr.bf16.mxu0 %v716
        %1157 = vmatpush1.bf16.msra.mxu0 %v715
        %1158 = vmatprep.subr.bf16.mxu0 %v720
        %1159 = vmatpush1.bf16.msra.mxu0 %v719
        %1160 = vmatprep.subr.bf16.mxu0 %v724
        %1161 = vmatpush1.bf16.msra.mxu0 %v723
        %1162 = vmatprep.subr.bf16.mxu0 0
        %1163 = vmatpush1.bf16.msra.mxu0 0
        %1164 = vmatprep.subr.bf16.mxu0 0
        %1165 = vmatpush1.bf16.msra.mxu0 0
        %1166 = vmatprep.subr.bf16.mxu0 0
        %1167 = vmatpush1.bf16.msra.mxu0 0
        %1168 = vmatprep.subr.bf16.mxu0 0
        %1169 = vmatpush1.bf16.msra.mxu0 0
        %1170 = vmatprep.subr.bf16.mxu0 0
        %1171 = vmatpush1.bf16.msra.mxu0 0
        %1172 = vmatprep.subr.bf16.mxu0 0
        %1173 = vmatpush1.bf16.msra.mxu0 0
        %1174 = vmatprep.subr.bf16.mxu0 0
        %1175 = vmatpush1.bf16.msra.mxu0 0
        %1176 = vmatprep.subr.bf16.mxu0 0
        %1177 = vmatpush1.bf16.msra.mxu0 0
        %1178 = vmatprep.mubr.bf16.mxu0 0
        %1179 = vmatmul.mubr.bf16.gmra.mrb[0].mxu0 %v1104
        %v1180 = vpop.f32.mrb[0].mxu0
        %v1181 = vadd.f32 0.0, %v1180
        %v1182 = vpop.f32.mrb[0].mxu0
        %v1183 = vadd.f32 0.0, %v1182
        %v1184 = vpop.f32.mrb[0].mxu0
        %v1185 = vpop.f32.mrb[0].mxu0
        %1186 = vdwg.mxu0
        %v1187 = vadd.f32 %v1100, %v1140
        %v1188 = vadd.f32 %v1101, %v1142
        %v1189 = vadd.f32 %v1102, %v1181
        %v1190 = vadd.f32 %v1103, %v1183
        %v1191 = vxor.u32 %v1187, 2147483648
        %v1192 = vmul.f32 %v1191, 1.442695
        %v1193 = vpow.pop %v1192
        %v1194 = vadd.f32 %v1193, 1.0
        %v1195 = vrcp.pop %v1194
        %v1196 = vmul.f32 1.0, %v1195
        %v1197 = vxor.u32 %v1188, 2147483648
        %v1198 = vmul.f32 %v1197, 1.442695
        %v1199 = vpow.pop %v1198
        %v1200 = vadd.f32 %v1199, 1.0
        %v1201 = vrcp.pop %v1200
        %v1202 = vmul.f32 1.0, %v1201
        %v1203 = vtanh.pop %v1189
        %v1204 = vxor.u32 %v1190, 2147483648
        %v1205 = vmul.f32 %v1204, 1.442695
        %v1206 = vpow.pop %v1205
        %v1207 = vadd.f32 %v1206, 1.0
        %v1208 = vrcp.pop %v1207
        %v1209 = vmul.f32 1.0, %v1208
        %v1210 = vmul.f32 %v1202, %v1096
        %v1211 = vmul.f32 %v1196, %v1203
        %v1212 = vadd.f32 %v1210, %v1211
        %v1213 = vtanh.pop %v1212
        %v1214 = vmul.f32 %v1209, %v1213
        %s1215 = scalar_lea.vmem [#allocation2], 128
        %v1216 = vld [vmem:[%s1215] sm:$0xff]
        %v1217 = vld [vmem:[%s1215 + $0x8] sm:$0xff]
        %v1218 = vld [vmem:[%s1215 + $0x10] sm:$0xff]
        %v1219 = vld [vmem:[%s1215 + $0x18] sm:$0xff]
        %v1220 = vpack.c.bf16 %v1214, %v1214
        %1221 = vmatprep.subr.bf16.mxu0 %v694
        %1222 = vmatpush1.bf16.msra.mxu0 %v693
        %1223 = vmatprep.subr.bf16.mxu0 %v698
        %1224 = vmatpush1.bf16.msra.mxu0 %v697
        %1225 = vmatprep.subr.bf16.mxu0 %v702
        %1226 = vmatpush1.bf16.msra.mxu0 %v701
        %1227 = vmatprep.subr.bf16.mxu0 %v706
        %1228 = vmatpush1.bf16.msra.mxu0 %v705
        %1229 = vmatprep.subr.bf16.mxu0 %v710
        %1230 = vmatpush1.bf16.msra.mxu0 %v709
        %1231 = vmatprep.subr.bf16.mxu0 %v714
        %1232 = vmatpush1.bf16.msra.mxu0 %v713
        %1233 = vmatprep.subr.bf16.mxu0 %v718
        %1234 = vmatpush1.bf16.msra.mxu0 %v717
        %1235 = vmatprep.subr.bf16.mxu0 %v722
        %1236 = vmatpush1.bf16.msra.mxu0 %v721
        %1237 = vmatprep.subr.bf16.mxu0 0
        %1238 = vmatpush1.bf16.msra.mxu0 0
        %1239 = vmatprep.subr.bf16.mxu0 0
        %1240 = vmatpush1.bf16.msra.mxu0 0
        %1241 = vmatprep.subr.bf16.mxu0 0
        %1242 = vmatpush1.bf16.msra.mxu0 0
        %1243 = vmatprep.subr.bf16.mxu0 0
        %1244 = vmatpush1.bf16.msra.mxu0 0
        %1245 = vmatprep.subr.bf16.mxu0 0
        %1246 = vmatpush1.bf16.msra.mxu0 0
        %1247 = vmatprep.subr.bf16.mxu0 0
        %1248 = vmatpush1.bf16.msra.mxu0 0
        %1249 = vmatprep.subr.bf16.mxu0 0
        %1250 = vmatpush1.bf16.msra.mxu0 0
        %1251 = vmatprep.subr.bf16.mxu0 0
        %1252 = vmatpush1.bf16.msra.mxu0 0
        %1253 = vmatprep.mubr.bf16.mxu0 0
        %1254 = vmatmul.mubr.bf16.gmra.mrb[0].mxu0 %v1220
        %v1255 = vpop.f32.mrb[0].mxu0
        %v1256 = vadd.f32 0.0, %v1255
        %v1257 = vpop.f32.mrb[0].mxu0
        %v1258 = vadd.f32 0.0, %v1257
        %v1259 = vpop.f32.mrb[0].mxu0
        %v1260 = vpop.f32.mrb[0].mxu0
        %1261 = vdwg.mxu0
        %1262 = vmatprep.subr.bf16.mxu0 %v696
        %1263 = vmatpush1.bf16.msra.mxu0 %v695
        %1264 = vmatprep.subr.bf16.mxu0 %v700
        %1265 = vmatpush1.bf16.msra.mxu0 %v699
        %1266 = vmatprep.subr.bf16.mxu0 %v704
        %1267 = vmatpush1.bf16.msra.mxu0 %v703
        %1268 = vmatprep.subr.bf16.mxu0 %v708
        %1269 = vmatpush1.bf16.msra.mxu0 %v707
        %1270 = vmatprep.subr.bf16.mxu0 %v712
        %1271 = vmatpush1.bf16.msra.mxu0 %v711
        %1272 = vmatprep.subr.bf16.mxu0 %v716
        %1273 = vmatpush1.bf16.msra.mxu0 %v715
        %1274 = vmatprep.subr.bf16.mxu0 %v720
        %1275 = vmatpush1.bf16.msra.mxu0 %v719
        %1276 = vmatprep.subr.bf16.mxu0 %v724
        %1277 = vmatpush1.bf16.msra.mxu0 %v723
        %1278 = vmatprep.subr.bf16.mxu0 0
        %1279 = vmatpush1.bf16.msra.mxu0 0
        %1280 = vmatprep.subr.bf16.mxu0 0
        %1281 = vmatpush1.bf16.msra.mxu0 0
        %1282 = vmatprep.subr.bf16.mxu0 0
        %1283 = vmatpush1.bf16.msra.mxu0 0
        %1284 = vmatprep.subr.bf16.mxu0 0
        %1285 = vmatpush1.bf16.msra.mxu0 0
        %1286 = vmatprep.subr.bf16.mxu0 0
        %1287 = vmatpush1.bf16.msra.mxu0 0
        %1288 = vmatprep.subr.bf16.mxu0 0
        %1289 = vmatpush1.bf16.msra.mxu0 0
        %1290 = vmatprep.subr.bf16.mxu0 0
        %1291 = vmatpush1.bf16.msra.mxu0 0
        %1292 = vmatprep.subr.bf16.mxu0 0
        %1293 = vmatpush1.bf16.msra.mxu0 0
        %1294 = vmatprep.mubr.bf16.mxu0 0
        %1295 = vmatmul.mubr.bf16.gmra.mrb[0].mxu0 %v1220
        %v1296 = vpop.f32.mrb[0].mxu0
        %v1297 = vadd.f32 0.0, %v1296
        %v1298 = vpop.f32.mrb[0].mxu0
        %v1299 = vadd.f32 0.0, %v1298
        %v1300 = vpop.f32.mrb[0].mxu0
        %v1301 = vpop.f32.mrb[0].mxu0
        %1302 = vdwg.mxu0
        %v1303 = vadd.f32 %v1216, %v1256
        %v1304 = vadd.f32 %v1217, %v1258
        %v1305 = vadd.f32 %v1218, %v1297
        %v1306 = vadd.f32 %v1219, %v1299
        %v1307 = vxor.u32 %v1303, 2147483648
        %v1308 = vmul.f32 %v1307, 1.442695
        %v1309 = vpow.pop %v1308
        %v1310 = vadd.f32 %v1309, 1.0
        %v1311 = vrcp.pop %v1310
        %v1312 = vmul.f32 1.0, %v1311
        %v1313 = vxor.u32 %v1304, 2147483648
        %v1314 = vmul.f32 %v1313, 1.442695
        %v1315 = vpow.pop %v1314
        %v1316 = vadd.f32 %v1315, 1.0
        %v1317 = vrcp.pop %v1316
        %v1318 = vmul.f32 1.0, %v1317
        %v1319 = vtanh.pop %v1305
        %v1320 = vxor.u32 %v1306, 2147483648
        %v1321 = vmul.f32 %v1320, 1.442695
        %v1322 = vpow.pop %v1321
        %v1323 = vadd.f32 %v1322, 1.0
        %v1324 = vrcp.pop %v1323
        %v1325 = vmul.f32 1.0, %v1324
        %v1326 = vmul.f32 %v1318, %v1212
        %v1327 = vmul.f32 %v1312, %v1319
        %v1328 = vadd.f32 %v1326, %v1327
        %v1329 = vtanh.pop %v1328
        %v1330 = vmul.f32 %v1325, %v1329
        %s1331 = scalar_lea.vmem [#allocation2], 160
        %v1332 = vld [vmem:[%s1331] sm:$0xff]
        %v1333 = vld [vmem:[%s1331 + $0x8] sm:$0xff]
        %v1334 = vld [vmem:[%s1331 + $0x10] sm:$0xff]
        %v1335 = vld [vmem:[%s1331 + $0x18] sm:$0xff]
        %v1336 = vpack.c.bf16 %v1330, %v1330
        %1337 = vmatprep.subr.bf16.mxu0 %v694
        %1338 = vmatpush1.bf16.msra.mxu0 %v693
        %1339 = vmatprep.subr.bf16.mxu0 %v698
        %1340 = vmatpush1.bf16.msra.mxu0 %v697
        %1341 = vmatprep.subr.bf16.mxu0 %v702
        %1342 = vmatpush1.bf16.msra.mxu0 %v701
        %1343 = vmatprep.subr.bf16.mxu0 %v706
        %1344 = vmatpush1.bf16.msra.mxu0 %v705
        %1345 = vmatprep.subr.bf16.mxu0 %v710
        %1346 = vmatpush1.bf16.msra.mxu0 %v709
        %1347 = vmatprep.subr.bf16.mxu0 %v714
        %1348 = vmatpush1.bf16.msra.mxu0 %v713
        %1349 = vmatprep.subr.bf16.mxu0 %v718
        %1350 = vmatpush1.bf16.msra.mxu0 %v717
        %1351 = vmatprep.subr.bf16.mxu0 %v722
        %1352 = vmatpush1.bf16.msra.mxu0 %v721
        %1353 = vmatprep.subr.bf16.mxu0 0
        %1354 = vmatpush1.bf16.msra.mxu0 0
        %1355 = vmatprep.subr.bf16.mxu0 0
        %1356 = vmatpush1.bf16.msra.mxu0 0
        %1357 = vmatprep.subr.bf16.mxu0 0
        %1358 = vmatpush1.bf16.msra.mxu0 0
        %1359 = vmatprep.subr.bf16.mxu0 0
        %1360 = vmatpush1.bf16.msra.mxu0 0
        %1361 = vmatprep.subr.bf16.mxu0 0
        %1362 = vmatpush1.bf16.msra.mxu0 0
        %1363 = vmatprep.subr.bf16.mxu0 0
        %1364 = vmatpush1.bf16.msra.mxu0 0
        %1365 = vmatprep.subr.bf16.mxu0 0
        %1366 = vmatpush1.bf16.msra.mxu0 0
        %1367 = vmatprep.subr.bf16.mxu0 0
        %1368 = vmatpush1.bf16.msra.mxu0 0
        %1369 = vmatprep.mubr.bf16.mxu0 0
        %1370 = vmatmul.mubr.bf16.gmra.mrb[0].mxu0 %v1336
        %v1371 = vpop.f32.mrb[0].mxu0
        %v1372 = vadd.f32 0.0, %v1371
        %v1373 = vpop.f32.mrb[0].mxu0
        %v1374 = vadd.f32 0.0, %v1373
        %v1375 = vpop.f32.mrb[0].mxu0
        %v1376 = vpop.f32.mrb[0].mxu0
        %1377 = vdwg.mxu0
        %1378 = vmatprep.subr.bf16.mxu0 %v696
        %1379 = vmatpush1.bf16.msra.mxu0 %v695
        %1380 = vmatprep.subr.bf16.mxu0 %v700
        %1381 = vmatpush1.bf16.msra.mxu0 %v699
        %1382 = vmatprep.subr.bf16.mxu0 %v704
        %1383 = vmatpush1.bf16.msra.mxu0 %v703
        %1384 = vmatprep.subr.bf16.mxu0 %v708
        %1385 = vmatpush1.bf16.msra.mxu0 %v707
        %1386 = vmatprep.subr.bf16.mxu0 %v712
        %1387 = vmatpush1.bf16.msra.mxu0 %v711
        %1388 = vmatprep.subr.bf16.mxu0 %v716
        %1389 = vmatpush1.bf16.msra.mxu0 %v715
        %1390 = vmatprep.subr.bf16.mxu0 %v720
        %1391 = vmatpush1.bf16.msra.mxu0 %v719
        %1392 = vmatprep.subr.bf16.mxu0 %v724
        %1393 = vmatpush1.bf16.msra.mxu0 %v723
        %1394 = vmatprep.subr.bf16.mxu0 0
        %1395 = vmatpush1.bf16.msra.mxu0 0
        %1396 = vmatprep.subr.bf16.mxu0 0
        %1397 = vmatpush1.bf16.msra.mxu0 0
        %1398 = vmatprep.subr.bf16.mxu0 0
        %1399 = vmatpush1.bf16.msra.mxu0 0
        %1400 = vmatprep.subr.bf16.mxu0 0
        %1401 = vmatpush1.bf16.msra.mxu0 0
        %1402 = vmatprep.subr.bf16.mxu0 0
        %1403 = vmatpush1.bf16.msra.mxu0 0
        %1404 = vmatprep.subr.bf16.mxu0 0
        %1405 = vmatpush1.bf16.msra.mxu0 0
        %1406 = vmatprep.subr.bf16.mxu0 0
        %1407 = vmatpush1.bf16.msra.mxu0 0
        %1408 = vmatprep.subr.bf16.mxu0 0
        %1409 = vmatpush1.bf16.msra.mxu0 0
        %1410 = vmatprep.mubr.bf16.mxu0 0
        %1411 = vmatmul.mubr.bf16.gmra.mrb[0].mxu0 %v1336
        %v1412 = vpop.f32.mrb[0].mxu0
        %v1413 = vadd.f32 0.0, %v1412
        %v1414 = vpop.f32.mrb[0].mxu0
        %v1415 = vadd.f32 0.0, %v1414
        %v1416 = vpop.f32.mrb[0].mxu0
        %v1417 = vpop.f32.mrb[0].mxu0
        %1418 = vdwg.mxu0
        %v1419 = vadd.f32 %v1332, %v1372
        %v1420 = vadd.f32 %v1333, %v1374
        %v1421 = vadd.f32 %v1334, %v1413
        %v1422 = vadd.f32 %v1335, %v1415
        %v1423 = vxor.u32 %v1419, 2147483648
        %v1424 = vmul.f32 %v1423, 1.442695
        %v1425 = vpow.pop %v1424
        %v1426 = vadd.f32 %v1425, 1.0
        %v1427 = vrcp.pop %v1426
        %v1428 = vmul.f32 1.0, %v1427
        %v1429 = vxor.u32 %v1420, 2147483648
        %v1430 = vmul.f32 %v1429, 1.442695
        %v1431 = vpow.pop %v1430
        %v1432 = vadd.f32 %v1431, 1.0
        %v1433 = vrcp.pop %v1432
        %v1434 = vmul.f32 1.0, %v1433
        %v1435 = vtanh.pop %v1421
        %v1436 = vxor.u32 %v1422, 2147483648
        %v1437 = vmul.f32 %v1436, 1.442695
        %v1438 = vpow.pop %v1437
        %v1439 = vadd.f32 %v1438, 1.0
        %v1440 = vrcp.pop %v1439
        %v1441 = vmul.f32 1.0, %v1440
        %v1442 = vmul.f32 %v1434, %v1328
        %v1443 = vmul.f32 %v1428, %v1435
        %v1444 = vadd.f32 %v1442, %v1443
        %v1445 = vtanh.pop %v1444
        %v1446 = vmul.f32 %v1441, %v1445
        %s1447 = scalar_lea.vmem [#allocation2], 192
        %v1448 = vld [vmem:[%s1447] sm:$0xff]
        %v1449 = vld [vmem:[%s1447 + $0x8] sm:$0xff]
        %v1450 = vld [vmem:[%s1447 + $0x10] sm:$0xff]
        %v1451 = vld [vmem:[%s1447 + $0x18] sm:$0xff]
        %v1452 = vpack.c.bf16 %v1446, %v1446
        %1453 = vmatprep.subr.bf16.mxu0 %v694
        %1454 = vmatpush1.bf16.msra.mxu0 %v693
        %1455 = vmatprep.subr.bf16.mxu0 %v698
        %1456 = vmatpush1.bf16.msra.mxu0 %v697
        %1457 = vmatprep.subr.bf16.mxu0 %v702
        %1458 = vmatpush1.bf16.msra.mxu0 %v701
        %1459 = vmatprep.subr.bf16.mxu0 %v706
        %1460 = vmatpush1.bf16.msra.mxu0 %v705
        %1461 = vmatprep.subr.bf16.mxu0 %v710
        %1462 = vmatpush1.bf16.msra.mxu0 %v709
        %1463 = vmatprep.subr.bf16.mxu0 %v714
        %1464 = vmatpush1.bf16.msra.mxu0 %v713
        %1465 = vmatprep.subr.bf16.mxu0 %v718
        %1466 = vmatpush1.bf16.msra.mxu0 %v717
        %1467 = vmatprep.subr.bf16.mxu0 %v722
        %1468 = vmatpush1.bf16.msra.mxu0 %v721
        %1469 = vmatprep.subr.bf16.mxu0 0
        %1470 = vmatpush1.bf16.msra.mxu0 0
        %1471 = vmatprep.subr.bf16.mxu0 0
        %1472 = vmatpush1.bf16.msra.mxu0 0
        %1473 = vmatprep.subr.bf16.mxu0 0
        %1474 = vmatpush1.bf16.msra.mxu0 0
        %1475 = vmatprep.subr.bf16.mxu0 0
        %1476 = vmatpush1.bf16.msra.mxu0 0
        %1477 = vmatprep.subr.bf16.mxu0 0
        %1478 = vmatpush1.bf16.msra.mxu0 0
        %1479 = vmatprep.subr.bf16.mxu0 0
        %1480 = vmatpush1.bf16.msra.mxu0 0
        %1481 = vmatprep.subr.bf16.mxu0 0
        %1482 = vmatpush1.bf16.msra.mxu0 0
        %1483 = vmatprep.subr.bf16.mxu0 0
        %1484 = vmatpush1.bf16.msra.mxu0 0
        %1485 = vmatprep.mubr.bf16.mxu0 0
        %1486 = vmatmul.mubr.bf16.gmra.mrb[0].mxu0 %v1452
        %v1487 = vpop.f32.mrb[0].mxu0
        %v1488 = vadd.f32 0.0, %v1487
        %v1489 = vpop.f32.mrb[0].mxu0
        %v1490 = vadd.f32 0.0, %v1489
        %v1491 = vpop.f32.mrb[0].mxu0
        %v1492 = vpop.f32.mrb[0].mxu0
        %1493 = vdwg.mxu0
        %1494 = vmatprep.subr.bf16.mxu0 %v696
        %1495 = vmatpush1.bf16.msra.mxu0 %v695
        %1496 = vmatprep.subr.bf16.mxu0 %v700
        %1497 = vmatpush1.bf16.msra.mxu0 %v699
        %1498 = vmatprep.subr.bf16.mxu0 %v704
        %1499 = vmatpush1.bf16.msra.mxu0 %v703
        %1500 = vmatprep.subr.bf16.mxu0 %v708
        %1501 = vmatpush1.bf16.msra.mxu0 %v707
        %1502 = vmatprep.subr.bf16.mxu0 %v712
        %1503 = vmatpush1.bf16.msra.mxu0 %v711
        %1504 = vmatprep.subr.bf16.mxu0 %v716
        %1505 = vmatpush1.bf16.msra.mxu0 %v715
        %1506 = vmatprep.subr.bf16.mxu0 %v720
        %1507 = vmatpush1.bf16.msra.mxu0 %v719
        %1508 = vmatprep.subr.bf16.mxu0 %v724
        %1509 = vmatpush1.bf16.msra.mxu0 %v723
        %1510 = vmatprep.subr.bf16.mxu0 0
        %1511 = vmatpush1.bf16.msra.mxu0 0
        %1512 = vmatprep.subr.bf16.mxu0 0
        %1513 = vmatpush1.bf16.msra.mxu0 0
        %1514 = vmatprep.subr.bf16.mxu0 0
        %1515 = vmatpush1.bf16.msra.mxu0 0
        %1516 = vmatprep.subr.bf16.mxu0 0
        %1517 = vmatpush1.bf16.msra.mxu0 0
        %1518 = vmatprep.subr.bf16.mxu0 0
        %1519 = vmatpush1.bf16.msra.mxu0 0
        %1520 = vmatprep.subr.bf16.mxu0 0
        %1521 = vmatpush1.bf16.msra.mxu0 0
        %1522 = vmatprep.subr.bf16.mxu0 0
        %1523 = vmatpush1.bf16.msra.mxu0 0
        %1524 = vmatprep.subr.bf16.mxu0 0
        %1525 = vmatpush1.bf16.msra.mxu0 0
        %1526 = vmatprep.mubr.bf16.mxu0 0
        %1527 = vmatmul.mubr.bf16.gmra.mrb[0].mxu0 %v1452
        %v1528 = vpop.f32.mrb[0].mxu0
        %v1529 = vadd.f32 0.0, %v1528
        %v1530 = vpop.f32.mrb[0].mxu0
        %v1531 = vadd.f32 0.0, %v1530
        %v1532 = vpop.f32.mrb[0].mxu0
        %v1533 = vpop.f32.mrb[0].mxu0
        %1534 = vdwg.mxu0
        %v1535 = vadd.f32 %v1448, %v1488
        %v1536 = vadd.f32 %v1449, %v1490
        %v1537 = vadd.f32 %v1450, %v1529
        %v1538 = vadd.f32 %v1451, %v1531
        %v1539 = vxor.u32 %v1535, 2147483648
        %v1540 = vmul.f32 %v1539, 1.442695
        %v1541 = vpow.pop %v1540
        %v1542 = vadd.f32 %v1541, 1.0
        %v1543 = vrcp.pop %v1542
        %v1544 = vmul.f32 1.0, %v1543
        %v1545 = vxor.u32 %v1536, 2147483648
        %v1546 = vmul.f32 %v1545, 1.442695
        %v1547 = vpow.pop %v1546
        %v1548 = vadd.f32 %v1547, 1.0
        %v1549 = vrcp.pop %v1548
        %v1550 = vmul.f32 1.0, %v1549
        %v1551 = vtanh.pop %v1537
        %v1552 = vxor.u32 %v1538, 2147483648
        %v1553 = vmul.f32 %v1552, 1.442695
        %v1554 = vpow.pop %v1553
        %v1555 = vadd.f32 %v1554, 1.0
        %v1556 = vrcp.pop %v1555
        %v1557 = vmul.f32 1.0, %v1556
        %v1558 = vmul.f32 %v1550, %v1444
        %v1559 = vmul.f32 %v1544, %v1551
        %v1560 = vadd.f32 %v1558, %v1559
        %v1561 = vtanh.pop %v1560
        %v1562 = vmul.f32 %v1557, %v1561
        %s1563 = scalar_lea.vmem [#allocation2], 224
        %v1564 = vld [vmem:[%s1563] sm:$0xff]
        %v1565 = vld [vmem:[%s1563 + $0x8] sm:$0xff]
        %v1566 = vld [vmem:[%s1563 + $0x10] sm:$0xff]
        %v1567 = vld [vmem:[%s1563 + $0x18] sm:$0xff]
        %v1568 = vpack.c.bf16 %v1562, %v1562
        %1569 = vmatprep.subr.bf16.mxu0 %v694
        %1570 = vmatpush1.bf16.msra.mxu0 %v693
        %1571 = vmatprep.subr.bf16.mxu0 %v698
        %1572 = vmatpush1.bf16.msra.mxu0 %v697
        %1573 = vmatprep.subr.bf16.mxu0 %v702
        %1574 = vmatpush1.bf16.msra.mxu0 %v701
        %1575 = vmatprep.subr.bf16.mxu0 %v706
        %1576 = vmatpush1.bf16.msra.mxu0 %v705
        %1577 = vmatprep.subr.bf16.mxu0 %v710
        %1578 = vmatpush1.bf16.msra.mxu0 %v709
        %1579 = vmatprep.subr.bf16.mxu0 %v714
        %1580 = vmatpush1.bf16.msra.mxu0 %v713
        %1581 = vmatprep.subr.bf16.mxu0 %v718
        %1582 = vmatpush1.bf16.msra.mxu0 %v717
        %1583 = vmatprep.subr.bf16.mxu0 %v722
        %1584 = vmatpush1.bf16.msra.mxu0 %v721
        %1585 = vmatprep.subr.bf16.mxu0 0
        %1586 = vmatpush1.bf16.msra.mxu0 0
        %1587 = vmatprep.subr.bf16.mxu0 0
        %1588 = vmatpush1.bf16.msra.mxu0 0
        %1589 = vmatprep.subr.bf16.mxu0 0
        %1590 = vmatpush1.bf16.msra.mxu0 0
        %1591 = vmatprep.subr.bf16.mxu0 0
        %1592 = vmatpush1.bf16.msra.mxu0 0
        %1593 = vmatprep.subr.bf16.mxu0 0
        %1594 = vmatpush1.bf16.msra.mxu0 0
        %1595 = vmatprep.subr.bf16.mxu0 0
        %1596 = vmatpush1.bf16.msra.mxu0 0
        %1597 = vmatprep.subr.bf16.mxu0 0
        %1598 = vmatpush1.bf16.msra.mxu0 0
        %1599 = vmatprep.subr.bf16.mxu0 0
        %1600 = vmatpush1.bf16.msra.mxu0 0
        %1601 = vmatprep.mubr.bf16.mxu0 0
        %1602 = vmatmul.mubr.bf16.gmra.mrb[0].mxu0 %v1568
        %v1603 = vpop.f32.mrb[0].mxu0
        %v1604 = vadd.f32 0.0, %v1603
        %v1605 = vpop.f32.mrb[0].mxu0
        %v1606 = vadd.f32 0.0, %v1605
        %v1607 = vpop.f32.mrb[0].mxu0
        %v1608 = vpop.f32.mrb[0].mxu0
        %1609 = vdwg.mxu0
        %1610 = vmatprep.subr.bf16.mxu0 %v696
        %1611 = vmatpush1.bf16.msra.mxu0 %v695
        %1612 = vmatprep.subr.bf16.mxu0 %v700
        %1613 = vmatpush1.bf16.msra.mxu0 %v699
        %1614 = vmatprep.subr.bf16.mxu0 %v704
        %1615 = vmatpush1.bf16.msra.mxu0 %v703
        %1616 = vmatprep.subr.bf16.mxu0 %v708
        %1617 = vmatpush1.bf16.msra.mxu0 %v707
        %1618 = vmatprep.subr.bf16.mxu0 %v712
        %1619 = vmatpush1.bf16.msra.mxu0 %v711
        %1620 = vmatprep.subr.bf16.mxu0 %v716
        %1621 = vmatpush1.bf16.msra.mxu0 %v715
        %1622 = vmatprep.subr.bf16.mxu0 %v720
        %1623 = vmatpush1.bf16.msra.mxu0 %v719
        %1624 = vmatprep.subr.bf16.mxu0 %v724
        %1625 = vmatpush1.bf16.msra.mxu0 %v723
        %1626 = vmatprep.subr.bf16.mxu0 0
        %1627 = vmatpush1.bf16.msra.mxu0 0
        %1628 = vmatprep.subr.bf16.mxu0 0
        %1629 = vmatpush1.bf16.msra.mxu0 0
        %1630 = vmatprep.subr.bf16.mxu0 0
        %1631 = vmatpush1.bf16.msra.mxu0 0
        %1632 = vmatprep.subr.bf16.mxu0 0
        %1633 = vmatpush1.bf16.msra.mxu0 0
        %1634 = vmatprep.subr.bf16.mxu0 0
        %1635 = vmatpush1.bf16.msra.mxu0 0
        %1636 = vmatprep.subr.bf16.mxu0 0
        %1637 = vmatpush1.bf16.msra.mxu0 0
        %1638 = vmatprep.subr.bf16.mxu0 0
        %1639 = vmatpush1.bf16.msra.mxu0 0
        %1640 = vmatprep.subr.bf16.mxu0 0
        %1641 = vmatpush1.bf16.msra.mxu0 0
        %1642 = vmatprep.mubr.bf16.mxu0 0
        %1643 = vmatmul.mubr.bf16.gmra.mrb[0].mxu0 %v1568
        %v1644 = vpop.f32.mrb[0].mxu0
        %v1645 = vadd.f32 0.0, %v1644
        %v1646 = vpop.f32.mrb[0].mxu0
        %v1647 = vadd.f32 0.0, %v1646
        %v1648 = vpop.f32.mrb[0].mxu0
        %v1649 = vpop.f32.mrb[0].mxu0
        %1650 = vdwg.mxu0
        %v1651 = vadd.f32 %v1564, %v1604
        %v1652 = vadd.f32 %v1565, %v1606
        %v1653 = vadd.f32 %v1566, %v1645
        %v1654 = vadd.f32 %v1567, %v1647
        %v1655 = vxor.u32 %v1651, 2147483648
        %v1656 = vmul.f32 %v1655, 1.442695
        %v1657 = vpow.pop %v1656
        %v1658 = vadd.f32 %v1657, 1.0
        %v1659 = vrcp.pop %v1658
        %v1660 = vmul.f32 1.0, %v1659
        %v1661 = vxor.u32 %v1652, 2147483648
        %v1662 = vmul.f32 %v1661, 1.442695
        %v1663 = vpow.pop %v1662
        %v1664 = vadd.f32 %v1663, 1.0
        %v1665 = vrcp.pop %v1664
        %v1666 = vmul.f32 1.0, %v1665
        %v1667 = vtanh.pop %v1653
        %v1668 = vxor.u32 %v1654, 2147483648
        %v1669 = vmul.f32 %v1668, 1.442695
        %v1670 = vpow.pop %v1669
        %v1671 = vadd.f32 %v1670, 1.0
        %v1672 = vrcp.pop %v1671
        %v1673 = vmul.f32 1.0, %v1672
        %v1674 = vmul.f32 %v1666, %v1560
        %v1675 = vmul.f32 %v1660, %v1667
        %v1676 = vadd.f32 %v1674, %v1675
        %v1677 = vtanh.pop %v1676
        %v1678 = vmul.f32 %v1673, %v1677
        %1679 = vst [vmem:[#allocation3] sm:$0xff] %v1678
        %1680 = vst [vmem:[#allocation4] sm:$0xff] %v1676
        // Predicated region
        $region53: #{tpu_custom_call.1} parent=35 // pred_check
          %p1681 = pneg %p263
        $region54: #{tpu_custom_call.1} parent=35 // pred_check_branch
          %1683 = sbr.rel (%p1681) target = $region56
        $region55: #{tpu_custom_call.1} parent=35 // pred_region
          %1684 = vst [vmem:[%s260] sm:$0xff] %v1678
        $region56: #{tpu_custom_call.1} parent=35 // pred_fallthru
          _
        %s1685 = sand.u32 %s133, 1
        %s1686 = scalar_lea.sflag [#allocation7], %s1685
        %s1687 = sand.u32 %s133, 1
        %s1688 = smul.addr %s1687, 8
        %s1689 = scalar_lea.vmem [#allocation11], %s1688
        // Predicated region
        $region57: #{tpu_custom_call.1} parent=35 // pred_check
          %p1690 = pneg %p143
        $region58: #{tpu_custom_call.1} parent=35 // pred_check_branch
          %1692 = sbr.rel (%p1690) target = $region60
        $region59: #{tpu_custom_call.1} parent=35 // pred_region
          %s1694 = ssub.s32 128, 128
          %1695 = vsyncadd %s1686, %s1694
          %s1696 = smul.addr %s26, 128
          %s1697 = scalar_lea.hbm %s4, %s1696
          %s1699 = sshll.u32 %s1689, 4
          %s1700 = int_to_ptr.vmem [resolvable:$true] %s1699
          %1702 = dma.vmem_to_hbm [thread:$0]  %s1700, 128, %s1697, %s1686
        $region60: #{tpu_custom_call.1} parent=35 // pred_fallthru
          _
      $region36: #{tpu_custom_call.1} parent=5 // pred_fallthru
        _
      %p1703 = scmp.le.s32.totalorder 2, %s17
      // Predicated region
      $region61: #{tpu_custom_call.1} parent=5 // pred_check
        %p1704 = pneg %p1703
      $region62: #{tpu_custom_call.1} parent=5 // pred_check_branch
        %1706 = sbr.rel (%p1704) target = $region64
      $region63: #{tpu_custom_call.1} parent=5 // pred_region
        %s1707 = ssub.s32 %s17, 2
        // Predicated region
        $region65: #{tpu_custom_call.1} parent=63 // pred_check
          %p1708 = pneg %p149
        $region66: #{tpu_custom_call.1} parent=63 // pred_check_branch
          %1710 = sbr.rel (%p1708) target = $region68
        $region67: #{tpu_custom_call.1} parent=63 // pred_region
          %s1711 = sand.u32 %s134, 1
          %s1712 = scalar_lea.sflag [#allocation7], %s1711
          %s1713 = sand.u32 %s134, 1
          %s1714 = smul.addr %s1713, 8
          %s1715 = scalar_lea.vmem [#allocation11], %s1714
          %1716 = dma.done %s1712, 128
        $region68: #{tpu_custom_call.1} parent=63 // pred_fallthru
          _
      $region64: #{tpu_custom_call.1} parent=5 // pred_fallthru
        _
    $region6: #{tpu_custom_call.1} parent=1 // loop_footer
      %s21 = sadd.s32 1, %s17
    $region7: #{tpu_custom_call.1} parent=1 // loop_footer_branch
      %16 = sbr.rel target = $region3
    $region8: #{tpu_custom_call.1} parent=1 // loop_exit
      _
    %1717 = vsyncpa [#allocation6], 1
    %s1718 = scalar_lea.sflag [#allocation6], 1
    %1719 = vsyncpa %s1718, 1
    %1720 = vsyncpa [#allocation9], 1
    %1721 = vsyncpa [#allocation7], 1
    %s1722 = scalar_lea.sflag [#allocation7], 1
    %1723 = vsyncpa %s1722, 1

</llo_original>
